<compile_context>
chip_gen: v7x
topology: tpu7x:2x2x1
jax: 0.10.0
libtpu: 0.0.40
codegen_flags: <defaults>
</compile_context>

<pallas_src>
import functools

import jax
import jax.numpy as jnp
from jax.experimental import pallas as pl
from jax.experimental.pallas import tpu as pltpu

HID_PAD = 128  # Linear(980,100) hidden dim padded to a full lane tile
OUT_PAD = 128  # Linear(100,10) output dim padded to a full lane tile (lane-dense stores)


def _fused_kernel(taps_ref, wc_ref, bc_ref, w1_ref, b1_ref, w2_ref, b2_ref, o_ref):
    # taps_ref: (4, TILE_N, 196) VMEM bf16 -- 4 taps (kh*2+kw) of each 2x2/stride-2 window
    # wc_ref:   (5, 4)   SMEM f32          -- conv weights (out_channel, tap) scalars
    # bc_ref:   (5,)     SMEM f32          -- conv bias
    # w1_ref:   (5, 196, 128) VMEM bf16    -- Linear(980,100) split per conv channel, padded
    # b1_ref:   (1, 128)  VMEM f32
    # w2_ref:   (128, 128) VMEM bf16       -- Linear(100,10), hidden & output padded w/ zeros
    # b2_ref:   (1, 128)  VMEM f32
    # o_ref:    (TILE_N, 128) VMEM f32

    def channel_contrib(c):
        # 2x2 conv for output channel c as 4 scalar*vector FMAs on the VPU; taps are
        # re-loaded per channel so their live range is one channel, not five.
        conv_c = (taps_ref[0].astype(jnp.float32) * wc_ref[c, 0]
                  + taps_ref[1].astype(jnp.float32) * wc_ref[c, 1]
                  + taps_ref[2].astype(jnp.float32) * wc_ref[c, 2]
                  + taps_ref[3].astype(jnp.float32) * wc_ref[c, 3]
                  + bc_ref[c])
        conv_c = jnp.maximum(conv_c, 0.0)
        # Per-channel slab of Linear(980,100): (TILE_N,196) @ (196,128) in bf16 on the MXU,
        # f32 accumulation.
        return jnp.dot(conv_c.astype(jnp.bfloat16), w1_ref[c],
                       preferred_element_type=jnp.float32)

    # Peel c == 0: initializes the accumulator without an explicit zero-fill pass.
    h = channel_contrib(0)
    for c in range(1, 5):  # unrolled over the remaining conv output channels
        h = h + channel_contrib(c)

    h = jnp.maximum(h + b1_ref[...], 0.0)
    o_ref[...] = (jnp.dot(h.astype(jnp.bfloat16), w2_ref[...],
                          preferred_element_type=jnp.float32)
                  + b2_ref[...])


def prepare_params(wc, bc, w1, b1, w2, b2):
    """One-time conversion of PyTorch-layout params into the fused-kernel layout."""
    wc_mat = wc.reshape(5, 4).astype(jnp.float32)            # (out_c, kh*2+kw)
    bc_vec = bc.astype(jnp.float32)                          # (5,)
    # PyTorch Flatten is channel-major: feat[c*196 + oh*14 + ow].  Splitting w1 per conv
    # channel removes the channel-major reorder from the forward pass entirely.
    w1_slabs = w1.reshape(100, 5, 196).transpose(1, 2, 0)    # (5, 196, 100)
    w1_slabs = jnp.pad(w1_slabs, ((0, 0), (0, 0), (0, HID_PAD - 100)))
    w1_slabs = w1_slabs.astype(jnp.bfloat16)                 # bf16 MXU operand
    b1_pad = jnp.pad(b1, (0, HID_PAD - 100)).reshape(1, HID_PAD).astype(jnp.float32)
    w2_mat = jnp.pad(w2.T, ((0, HID_PAD - 100), (0, OUT_PAD - 10))).astype(jnp.bfloat16)
    b2_pad = jnp.pad(b2, (0, OUT_PAD - 10)).reshape(1, OUT_PAD).astype(jnp.float32)
    return wc_mat, bc_vec, w1_slabs, b1_pad, w2_mat, b2_pad


def _round_up(a, b):
    return (a + b - 1) // b * b


@functools.partial(jax.jit, static_argnames=("tile_n",))
def sarda_forward(x, prepared, tile_n=None):
    wc_mat, bc_vec, w1_slabs, b1_pad, w2_mat, b2_pad = prepared
    N = x.shape[0]
    if tile_n is None:
        # Large tiles amortize the ~0.35us/grid-step overhead; splitting into >=2 tiles
        # once the batch is big enough lets "parallel" shard across v7x's 2 TensorCores.
        # Multiple of 16 keeps the bf16 taps block sublane-aligned.
        tile_n = min(1024, _round_up(max((N + 1) // 2, 16), 16))
    n_pad = _round_up(N, tile_n)

    # Glue: extract the 4 conv taps in a lane-dense (..., 196) layout, emitted in bf16 to
    # halve its HBM traffic.  Index (kh*2+kw, n, oh*14+ow).
    # TODO(synk): for large-batch pipelines, store inputs in this tap layout upstream to
    # drop this extra HBM pass entirely.
    xs = x.reshape(N, 28, 28)
    taps = xs.reshape(N, 14, 2, 14, 2).transpose(2, 4, 0, 1, 3).reshape(4, N, 196)
    taps = taps.astype(jnp.bfloat16)
    if n_pad != N:
        taps = jnp.pad(taps, ((0, 0), (0, n_pad - N), (0, 0)))

    out = pl.pallas_call(
        _fused_kernel,
        out_shape=jax.ShapeDtypeStruct((n_pad, OUT_PAD), jnp.float32),
        grid=(n_pad // tile_n,),
        in_specs=[
            pl.BlockSpec((4, tile_n, 196), lambda i: (0, i, 0)),          # activations
            pl.BlockSpec(memory_space=pltpu.MemorySpace.SMEM),            # conv weights
            pl.BlockSpec(memory_space=pltpu.MemorySpace.SMEM),            # conv bias
            pl.BlockSpec((5, 196, HID_PAD), lambda i: (0, 0, 0)),         # w1 (resident)
            pl.BlockSpec((1, HID_PAD), lambda i: (0, 0)),                 # b1 (resident)
            pl.BlockSpec((HID_PAD, OUT_PAD), lambda i: (0, 0)),           # w2 (resident)
            pl.BlockSpec((1, OUT_PAD), lambda i: (0, 0)),                 # b2 (resident)
        ],
        out_specs=pl.BlockSpec((tile_n, OUT_PAD), lambda i: (i, 0)),
        compiler_params=pltpu.CompilerParams(dimension_semantics=("parallel",)),
    )(taps, wc_mat, bc_vec, w1_slabs, b1_pad, w2_mat, b2_pad)
    return out[:N, :10]


def _reference(x, params):
    # Independent pure-JAX f32 reference (lax conv path, PyTorch param layout).
    wc, bc, w1, b1, w2, b2 = params
    N = x.shape[0]
    conv = jax.lax.conv_general_dilated(
        x, wc, window_strides=(2, 2), padding="VALID",
        dimension_numbers=("NCHW", "OIHW", "NCHW"),
    ) + bc.reshape(1, 5, 1, 1)
    conv = jnp.maximum(conv, 0.0)
    feat = conv.reshape(N, 980)                     # channel-major, like nn.Flatten
    h = jnp.maximum(feat @ w1.T + b1, 0.0)
    return h @ w2.T + b2


if __name__ == "__main__":
    key = jax.random.PRNGKey(0)
    ks = jax.random.split(key, 7)

    # Param shapes match nn.Conv2d(1,5,2,2) / Linear(980,100) / Linear(100,10)
    wc = jax.random.normal(ks[0], (5, 1, 2, 2), jnp.float32) * 0.5
    bc = jax.random.normal(ks[1], (5,), jnp.float32) * 0.1
    w1 = jax.random.normal(ks[2], (100, 980), jnp.float32) * 0.03
    b1 = jax.random.normal(ks[3], (100,), jnp.float32) * 0.01
    w2 = jax.random.normal(ks[4], (10, 100), jnp.float32) * 0.1
    b2 = jax.random.normal(ks[5], (10,), jnp.float32) * 0.01
    params = (wc, bc, w1, b1, w2, b2)

    # Input: batch=2, NCHW (1, 28, 28) — 28x28 is forced by Flatten->Linear(980, ...)
    x = jax.random.normal(ks[6], (2, 1, 28, 28), jnp.float32)

    prepared = prepare_params(*params)
    out = jax.block_until_ready(sarda_forward(x, prepared))
    ref = jax.block_until_ready(_reference(x, params))

    assert out.shape == (2, 10), out.shape
    # bf16 MXU operands + bf16 taps => looser tolerance vs the f32 reference.
    assert jnp.allclose(out, ref, atol=2e-2, rtol=2e-2), "mismatch vs reference"
    print("KERNEL_OK")
</pallas_src>

<mosaic_0001>
module attributes {stable_mosaic.version = 11 : i64} {
  func.func @_fused_kernel(%arg0: i32, %arg1: memref<4x16x196xbf16, #tpu.memory_space<vmem>>, %arg2: memref<5x4xf32, #tpu.memory_space<smem>>, %arg3: memref<5xf32, #tpu.memory_space<smem>>, %arg4: memref<5x196x128xbf16, #tpu.memory_space<vmem>>, %arg5: memref<1x128xf32, #tpu.memory_space<vmem>>, %arg6: memref<128x128xbf16, #tpu.memory_space<vmem>>, %arg7: memref<1x128xf32, #tpu.memory_space<vmem>>, %arg8: memref<16x128xf32, #tpu.memory_space<vmem>>) attributes {dimension_semantics = [#tpu.dimension_semantics<parallel>], iteration_bounds = array<i64: 1>, scalar_prefetch = 0 : i64, scratch_operands = 0 : i64, tpu.core_type = #tpu.core_type<tc>, window_params = [{transform_indices = @transform_0, window_bounds = array<i64: 4, 16, 196>}, {transform_indices = @transform_1, window_bounds = array<i64: 5, 4>}, {transform_indices = @transform_2, window_bounds = array<i64: 5>}, {pipeline_mode = #tpu.pipeline_mode<synchronous>, transform_indices = @transform_3, window_bounds = array<i64: 5, 196, 128>}, {pipeline_mode = #tpu.pipeline_mode<synchronous>, transform_indices = @transform_4, window_bounds = array<i64: 1, 128>}, {pipeline_mode = #tpu.pipeline_mode<synchronous>, transform_indices = @transform_5, window_bounds = array<i64: 128, 128>}, {pipeline_mode = #tpu.pipeline_mode<synchronous>, transform_indices = @transform_6, window_bounds = array<i64: 1, 128>}, {transform_indices = @transform_7, window_bounds = array<i64: 16, 128>}]} {
    %c0 = arith.constant 0 : index
    %c0_0 = arith.constant 0 : index
    %c0_1 = arith.constant 0 : index
    %0 = vector.load %arg1[%c0, %c0_0, %c0_1] : memref<4x16x196xbf16, #tpu.memory_space<vmem>>, vector<1x16x196xbf16>
    %1 = vector.shape_cast %0 : vector<1x16x196xbf16> to vector<16x196xbf16>
    %2 = arith.extf %1 : vector<16x196xbf16> to vector<16x196xf32>
    %c0_2 = arith.constant 0 : index
    %c0_3 = arith.constant 0 : index
    %3 = memref.load %arg2[%c0_2, %c0_3] : memref<5x4xf32, #tpu.memory_space<smem>>
    %4 = vector.broadcast %3 : f32 to vector<16x196xf32>
    %5 = arith.mulf %2, %4 : vector<16x196xf32>
    %c1 = arith.constant 1 : index
    %c0_4 = arith.constant 0 : index
    %c0_5 = arith.constant 0 : index
    %6 = vector.load %arg1[%c1, %c0_4, %c0_5] : memref<4x16x196xbf16, #tpu.memory_space<vmem>>, vector<1x16x196xbf16>
    %7 = vector.shape_cast %6 : vector<1x16x196xbf16> to vector<16x196xbf16>
    %8 = arith.extf %7 : vector<16x196xbf16> to vector<16x196xf32>
    %c0_6 = arith.constant 0 : index
    %c1_7 = arith.constant 1 : index
    %9 = memref.load %arg2[%c0_6, %c1_7] : memref<5x4xf32, #tpu.memory_space<smem>>
    %10 = vector.broadcast %9 : f32 to vector<16x196xf32>
    %11 = arith.mulf %8, %10 : vector<16x196xf32>
    %12 = arith.addf %5, %11 : vector<16x196xf32>
    %c2 = arith.constant 2 : index
    %c0_8 = arith.constant 0 : index
    %c0_9 = arith.constant 0 : index
    %13 = vector.load %arg1[%c2, %c0_8, %c0_9] : memref<4x16x196xbf16, #tpu.memory_space<vmem>>, vector<1x16x196xbf16>
    %14 = vector.shape_cast %13 : vector<1x16x196xbf16> to vector<16x196xbf16>
    %15 = arith.extf %14 : vector<16x196xbf16> to vector<16x196xf32>
    %c0_10 = arith.constant 0 : index
    %c2_11 = arith.constant 2 : index
    %16 = memref.load %arg2[%c0_10, %c2_11] : memref<5x4xf32, #tpu.memory_space<smem>>
    %17 = vector.broadcast %16 : f32 to vector<16x196xf32>
    %18 = arith.mulf %15, %17 : vector<16x196xf32>
    %19 = arith.addf %12, %18 : vector<16x196xf32>
    %c3 = arith.constant 3 : index
    %c0_12 = arith.constant 0 : index
    %c0_13 = arith.constant 0 : index
    %20 = vector.load %arg1[%c3, %c0_12, %c0_13] : memref<4x16x196xbf16, #tpu.memory_space<vmem>>, vector<1x16x196xbf16>
    %21 = vector.shape_cast %20 : vector<1x16x196xbf16> to vector<16x196xbf16>
    %22 = arith.extf %21 : vector<16x196xbf16> to vector<16x196xf32>
    %c0_14 = arith.constant 0 : index
    %c3_15 = arith.constant 3 : index
    %23 = memref.load %arg2[%c0_14, %c3_15] : memref<5x4xf32, #tpu.memory_space<smem>>
    %24 = vector.broadcast %23 : f32 to vector<16x196xf32>
    %25 = arith.mulf %22, %24 : vector<16x196xf32>
    %26 = arith.addf %19, %25 : vector<16x196xf32>
    %c0_16 = arith.constant 0 : index
    %27 = memref.load %arg3[%c0_16] : memref<5xf32, #tpu.memory_space<smem>>
    %28 = vector.broadcast %27 : f32 to vector<16x196xf32>
    %29 = arith.addf %26, %28 : vector<16x196xf32>
    %cst = arith.constant 0.000000e+00 : f32
    %30 = vector.broadcast %cst : f32 to vector<16x196xf32>
    %31 = arith.maximumf %29, %30 : vector<16x196xf32>
    %32 = arith.truncf %31 : vector<16x196xf32> to vector<16x196xbf16>
    %c0_17 = arith.constant 0 : index
    %c0_18 = arith.constant 0 : index
    %c0_19 = arith.constant 0 : index
    %33 = vector.load %arg4[%c0_17, %c0_18, %c0_19] : memref<5x196x128xbf16, #tpu.memory_space<vmem>>, vector<1x196x128xbf16>
    %34 = vector.shape_cast %33 : vector<1x196x128xbf16> to vector<196x128xbf16>
    %cst_20 = arith.constant dense<0.000000e+00> : vector<16x128xf32>
    %35 = tpu.matmul %32, %34, %cst_20 {dimension_numbers = #tpu.dot_dimension_numbers<[1], [0], [0], [1], [0, 0, 1, 1], [], []>} : vector<16x196xbf16>, vector<196x128xbf16>, vector<16x128xf32> -> vector<16x128xf32>
    %c0_21 = arith.constant 0 : index
    %c0_22 = arith.constant 0 : index
    %c0_23 = arith.constant 0 : index
    %36 = vector.load %arg1[%c0_21, %c0_22, %c0_23] : memref<4x16x196xbf16, #tpu.memory_space<vmem>>, vector<1x16x196xbf16>
    %37 = vector.shape_cast %36 : vector<1x16x196xbf16> to vector<16x196xbf16>
    %38 = arith.extf %37 : vector<16x196xbf16> to vector<16x196xf32>
    %c1_24 = arith.constant 1 : index
    %c0_25 = arith.constant 0 : index
    %39 = memref.load %arg2[%c1_24, %c0_25] : memref<5x4xf32, #tpu.memory_space<smem>>
    %40 = vector.broadcast %39 : f32 to vector<16x196xf32>
    %41 = arith.mulf %38, %40 : vector<16x196xf32>
    %c1_26 = arith.constant 1 : index
    %c0_27 = arith.constant 0 : index
    %c0_28 = arith.constant 0 : index
    %42 = vector.load %arg1[%c1_26, %c0_27, %c0_28] : memref<4x16x196xbf16, #tpu.memory_space<vmem>>, vector<1x16x196xbf16>
    %43 = vector.shape_cast %42 : vector<1x16x196xbf16> to vector<16x196xbf16>
    %44 = arith.extf %43 : vector<16x196xbf16> to vector<16x196xf32>
    %c1_29 = arith.constant 1 : index
    %c1_30 = arith.constant 1 : index
    %45 = memref.load %arg2[%c1_29, %c1_30] : memref<5x4xf32, #tpu.memory_space<smem>>
    %46 = vector.broadcast %45 : f32 to vector<16x196xf32>
    %47 = arith.mulf %44, %46 : vector<16x196xf32>
    %48 = arith.addf %41, %47 : vector<16x196xf32>
    %c2_31 = arith.constant 2 : index
    %c0_32 = arith.constant 0 : index
    %c0_33 = arith.constant 0 : index
    %49 = vector.load %arg1[%c2_31, %c0_32, %c0_33] : memref<4x16x196xbf16, #tpu.memory_space<vmem>>, vector<1x16x196xbf16>
    %50 = vector.shape_cast %49 : vector<1x16x196xbf16> to vector<16x196xbf16>
    %51 = arith.extf %50 : vector<16x196xbf16> to vector<16x196xf32>
    %c1_34 = arith.constant 1 : index
    %c2_35 = arith.constant 2 : index
    %52 = memref.load %arg2[%c1_34, %c2_35] : memref<5x4xf32, #tpu.memory_space<smem>>
    %53 = vector.broadcast %52 : f32 to vector<16x196xf32>
    %54 = arith.mulf %51, %53 : vector<16x196xf32>
    %55 = arith.addf %48, %54 : vector<16x196xf32>
    %c3_36 = arith.constant 3 : index
    %c0_37 = arith.constant 0 : index
    %c0_38 = arith.constant 0 : index
    %56 = vector.load %arg1[%c3_36, %c0_37, %c0_38] : memref<4x16x196xbf16, #tpu.memory_space<vmem>>, vector<1x16x196xbf16>
    %57 = vector.shape_cast %56 : vector<1x16x196xbf16> to vector<16x196xbf16>
    %58 = arith.extf %57 : vector<16x196xbf16> to vector<16x196xf32>
    %c1_39 = arith.constant 1 : index
    %c3_40 = arith.constant 3 : index
    %59 = memref.load %arg2[%c1_39, %c3_40] : memref<5x4xf32, #tpu.memory_space<smem>>
    %60 = vector.broadcast %59 : f32 to vector<16x196xf32>
    %61 = arith.mulf %58, %60 : vector<16x196xf32>
    %62 = arith.addf %55, %61 : vector<16x196xf32>
    %c1_41 = arith.constant 1 : index
    %63 = memref.load %arg3[%c1_41] : memref<5xf32, #tpu.memory_space<smem>>
    %64 = vector.broadcast %63 : f32 to vector<16x196xf32>
    %65 = arith.addf %62, %64 : vector<16x196xf32>
    %cst_42 = arith.constant 0.000000e+00 : f32
    %66 = vector.broadcast %cst_42 : f32 to vector<16x196xf32>
    %67 = arith.maximumf %65, %66 : vector<16x196xf32>
    %68 = arith.truncf %67 : vector<16x196xf32> to vector<16x196xbf16>
    %c1_43 = arith.constant 1 : index
    %c0_44 = arith.constant 0 : index
    %c0_45 = arith.constant 0 : index
    %69 = vector.load %arg4[%c1_43, %c0_44, %c0_45] : memref<5x196x128xbf16, #tpu.memory_space<vmem>>, vector<1x196x128xbf16>
    %70 = vector.shape_cast %69 : vector<1x196x128xbf16> to vector<196x128xbf16>
    %cst_46 = arith.constant dense<0.000000e+00> : vector<16x128xf32>
    %71 = tpu.matmul %68, %70, %cst_46 {dimension_numbers = #tpu.dot_dimension_numbers<[1], [0], [0], [1], [0, 0, 1, 1], [], []>} : vector<16x196xbf16>, vector<196x128xbf16>, vector<16x128xf32> -> vector<16x128xf32>
    %72 = arith.addf %35, %71 : vector<16x128xf32>
    %c0_47 = arith.constant 0 : index
    %c0_48 = arith.constant 0 : index
    %c0_49 = arith.constant 0 : index
    %73 = vector.load %arg1[%c0_47, %c0_48, %c0_49] : memref<4x16x196xbf16, #tpu.memory_space<vmem>>, vector<1x16x196xbf16>
    %74 = vector.shape_cast %73 : vector<1x16x196xbf16> to vector<16x196xbf16>
    %75 = arith.extf %74 : vector<16x196xbf16> to vector<16x196xf32>
    %c2_50 = arith.constant 2 : index
    %c0_51 = arith.constant 0 : index
    %76 = memref.load %arg2[%c2_50, %c0_51] : memref<5x4xf32, #tpu.memory_space<smem>>
    %77 = vector.broadcast %76 : f32 to vector<16x196xf32>
    %78 = arith.mulf %75, %77 : vector<16x196xf32>
    %c1_52 = arith.constant 1 : index
    %c0_53 = arith.constant 0 : index
    %c0_54 = arith.constant 0 : index
    %79 = vector.load %arg1[%c1_52, %c0_53, %c0_54] : memref<4x16x196xbf16, #tpu.memory_space<vmem>>, vector<1x16x196xbf16>
    %80 = vector.shape_cast %79 : vector<1x16x196xbf16> to vector<16x196xbf16>
    %81 = arith.extf %80 : vector<16x196xbf16> to vector<16x196xf32>
    %c2_55 = arith.constant 2 : index
    %c1_56 = arith.constant 1 : index
    %82 = memref.load %arg2[%c2_55, %c1_56] : memref<5x4xf32, #tpu.memory_space<smem>>
    %83 = vector.broadcast %82 : f32 to vector<16x196xf32>
    %84 = arith.mulf %81, %83 : vector<16x196xf32>
    %85 = arith.addf %78, %84 : vector<16x196xf32>
    %c2_57 = arith.constant 2 : index
    %c0_58 = arith.constant 0 : index
    %c0_59 = arith.constant 0 : index
    %86 = vector.load %arg1[%c2_57, %c0_58, %c0_59] : memref<4x16x196xbf16, #tpu.memory_space<vmem>>, vector<1x16x196xbf16>
    %87 = vector.shape_cast %86 : vector<1x16x196xbf16> to vector<16x196xbf16>
    %88 = arith.extf %87 : vector<16x196xbf16> to vector<16x196xf32>
    %c2_60 = arith.constant 2 : index
    %c2_61 = arith.constant 2 : index
    %89 = memref.load %arg2[%c2_60, %c2_61] : memref<5x4xf32, #tpu.memory_space<smem>>
    %90 = vector.broadcast %89 : f32 to vector<16x196xf32>
    %91 = arith.mulf %88, %90 : vector<16x196xf32>
    %92 = arith.addf %85, %91 : vector<16x196xf32>
    %c3_62 = arith.constant 3 : index
    %c0_63 = arith.constant 0 : index
    %c0_64 = arith.constant 0 : index
    %93 = vector.load %arg1[%c3_62, %c0_63, %c0_64] : memref<4x16x196xbf16, #tpu.memory_space<vmem>>, vector<1x16x196xbf16>
    %94 = vector.shape_cast %93 : vector<1x16x196xbf16> to vector<16x196xbf16>
    %95 = arith.extf %94 : vector<16x196xbf16> to vector<16x196xf32>
    %c2_65 = arith.constant 2 : index
    %c3_66 = arith.constant 3 : index
    %96 = memref.load %arg2[%c2_65, %c3_66] : memref<5x4xf32, #tpu.memory_space<smem>>
    %97 = vector.broadcast %96 : f32 to vector<16x196xf32>
    %98 = arith.mulf %95, %97 : vector<16x196xf32>
    %99 = arith.addf %92, %98 : vector<16x196xf32>
    %c2_67 = arith.constant 2 : index
    %100 = memref.load %arg3[%c2_67] : memref<5xf32, #tpu.memory_space<smem>>
    %101 = vector.broadcast %100 : f32 to vector<16x196xf32>
    %102 = arith.addf %99, %101 : vector<16x196xf32>
    %cst_68 = arith.constant 0.000000e+00 : f32
    %103 = vector.broadcast %cst_68 : f32 to vector<16x196xf32>
    %104 = arith.maximumf %102, %103 : vector<16x196xf32>
    %105 = arith.truncf %104 : vector<16x196xf32> to vector<16x196xbf16>
    %c2_69 = arith.constant 2 : index
    %c0_70 = arith.constant 0 : index
    %c0_71 = arith.constant 0 : index
    %106 = vector.load %arg4[%c2_69, %c0_70, %c0_71] : memref<5x196x128xbf16, #tpu.memory_space<vmem>>, vector<1x196x128xbf16>
    %107 = vector.shape_cast %106 : vector<1x196x128xbf16> to vector<196x128xbf16>
    %cst_72 = arith.constant dense<0.000000e+00> : vector<16x128xf32>
    %108 = tpu.matmul %105, %107, %cst_72 {dimension_numbers = #tpu.dot_dimension_numbers<[1], [0], [0], [1], [0, 0, 1, 1], [], []>} : vector<16x196xbf16>, vector<196x128xbf16>, vector<16x128xf32> -> vector<16x128xf32>
    %109 = arith.addf %72, %108 : vector<16x128xf32>
    %c0_73 = arith.constant 0 : index
    %c0_74 = arith.constant 0 : index
    %c0_75 = arith.constant 0 : index
    %110 = vector.load %arg1[%c0_73, %c0_74, %c0_75] : memref<4x16x196xbf16, #tpu.memory_space<vmem>>, vector<1x16x196xbf16>
    %111 = vector.shape_cast %110 : vector<1x16x196xbf16> to vector<16x196xbf16>
    %112 = arith.extf %111 : vector<16x196xbf16> to vector<16x196xf32>
    %c3_76 = arith.constant 3 : index
    %c0_77 = arith.constant 0 : index
    %113 = memref.load %arg2[%c3_76, %c0_77] : memref<5x4xf32, #tpu.memory_space<smem>>
    %114 = vector.broadcast %113 : f32 to vector<16x196xf32>
    %115 = arith.mulf %112, %114 : vector<16x196xf32>
    %c1_78 = arith.constant 1 : index
    %c0_79 = arith.constant 0 : index
    %c0_80 = arith.constant 0 : index
    %116 = vector.load %arg1[%c1_78, %c0_79, %c0_80] : memref<4x16x196xbf16, #tpu.memory_space<vmem>>, vector<1x16x196xbf16>
    %117 = vector.shape_cast %116 : vector<1x16x196xbf16> to vector<16x196xbf16>
    %118 = arith.extf %117 : vector<16x196xbf16> to vector<16x196xf32>
    %c3_81 = arith.constant 3 : index
    %c1_82 = arith.constant 1 : index
    %119 = memref.load %arg2[%c3_81, %c1_82] : memref<5x4xf32, #tpu.memory_space<smem>>
    %120 = vector.broadcast %119 : f32 to vector<16x196xf32>
    %121 = arith.mulf %118, %120 : vector<16x196xf32>
    %122 = arith.addf %115, %121 : vector<16x196xf32>
    %c2_83 = arith.constant 2 : index
    %c0_84 = arith.constant 0 : index
    %c0_85 = arith.constant 0 : index
    %123 = vector.load %arg1[%c2_83, %c0_84, %c0_85] : memref<4x16x196xbf16, #tpu.memory_space<vmem>>, vector<1x16x196xbf16>
    %124 = vector.shape_cast %123 : vector<1x16x196xbf16> to vector<16x196xbf16>
    %125 = arith.extf %124 : vector<16x196xbf16> to vector<16x196xf32>
    %c3_86 = arith.constant 3 : index
    %c2_87 = arith.constant 2 : index
    %126 = memref.load %arg2[%c3_86, %c2_87] : memref<5x4xf32, #tpu.memory_space<smem>>
    %127 = vector.broadcast %126 : f32 to vector<16x196xf32>
    %128 = arith.mulf %125, %127 : vector<16x196xf32>
    %129 = arith.addf %122, %128 : vector<16x196xf32>
    %c3_88 = arith.constant 3 : index
    %c0_89 = arith.constant 0 : index
    %c0_90 = arith.constant 0 : index
    %130 = vector.load %arg1[%c3_88, %c0_89, %c0_90] : memref<4x16x196xbf16, #tpu.memory_space<vmem>>, vector<1x16x196xbf16>
    %131 = vector.shape_cast %130 : vector<1x16x196xbf16> to vector<16x196xbf16>
    %132 = arith.extf %131 : vector<16x196xbf16> to vector<16x196xf32>
    %c3_91 = arith.constant 3 : index
    %c3_92 = arith.constant 3 : index
    %133 = memref.load %arg2[%c3_91, %c3_92] : memref<5x4xf32, #tpu.memory_space<smem>>
    %134 = vector.broadcast %133 : f32 to vector<16x196xf32>
    %135 = arith.mulf %132, %134 : vector<16x196xf32>
    %136 = arith.addf %129, %135 : vector<16x196xf32>
    %c3_93 = arith.constant 3 : index
    %137 = memref.load %arg3[%c3_93] : memref<5xf32, #tpu.memory_space<smem>>
    %138 = vector.broadcast %137 : f32 to vector<16x196xf32>
    %139 = arith.addf %136, %138 : vector<16x196xf32>
    %cst_94 = arith.constant 0.000000e+00 : f32
    %140 = vector.broadcast %cst_94 : f32 to vector<16x196xf32>
    %141 = arith.maximumf %139, %140 : vector<16x196xf32>
    %142 = arith.truncf %141 : vector<16x196xf32> to vector<16x196xbf16>
    %c3_95 = arith.constant 3 : index
    %c0_96 = arith.constant 0 : index
    %c0_97 = arith.constant 0 : index
    %143 = vector.load %arg4[%c3_95, %c0_96, %c0_97] : memref<5x196x128xbf16, #tpu.memory_space<vmem>>, vector<1x196x128xbf16>
    %144 = vector.shape_cast %143 : vector<1x196x128xbf16> to vector<196x128xbf16>
    %cst_98 = arith.constant dense<0.000000e+00> : vector<16x128xf32>
    %145 = tpu.matmul %142, %144, %cst_98 {dimension_numbers = #tpu.dot_dimension_numbers<[1], [0], [0], [1], [0, 0, 1, 1], [], []>} : vector<16x196xbf16>, vector<196x128xbf16>, vector<16x128xf32> -> vector<16x128xf32>
    %146 = arith.addf %109, %145 : vector<16x128xf32>
    %c0_99 = arith.constant 0 : index
    %c0_100 = arith.constant 0 : index
    %c0_101 = arith.constant 0 : index
    %147 = vector.load %arg1[%c0_99, %c0_100, %c0_101] : memref<4x16x196xbf16, #tpu.memory_space<vmem>>, vector<1x16x196xbf16>
    %148 = vector.shape_cast %147 : vector<1x16x196xbf16> to vector<16x196xbf16>
    %149 = arith.extf %148 : vector<16x196xbf16> to vector<16x196xf32>
    %c4 = arith.constant 4 : index
    %c0_102 = arith.constant 0 : index
    %150 = memref.load %arg2[%c4, %c0_102] : memref<5x4xf32, #tpu.memory_space<smem>>
    %151 = vector.broadcast %150 : f32 to vector<16x196xf32>
    %152 = arith.mulf %149, %151 : vector<16x196xf32>
    %c1_103 = arith.constant 1 : index
    %c0_104 = arith.constant 0 : index
    %c0_105 = arith.constant 0 : index
    %153 = vector.load %arg1[%c1_103, %c0_104, %c0_105] : memref<4x16x196xbf16, #tpu.memory_space<vmem>>, vector<1x16x196xbf16>
    %154 = vector.shape_cast %153 : vector<1x16x196xbf16> to vector<16x196xbf16>
    %155 = arith.extf %154 : vector<16x196xbf16> to vector<16x196xf32>
    %c4_106 = arith.constant 4 : index
    %c1_107 = arith.constant 1 : index
    %156 = memref.load %arg2[%c4_106, %c1_107] : memref<5x4xf32, #tpu.memory_space<smem>>
    %157 = vector.broadcast %156 : f32 to vector<16x196xf32>
    %158 = arith.mulf %155, %157 : vector<16x196xf32>
    %159 = arith.addf %152, %158 : vector<16x196xf32>
    %c2_108 = arith.constant 2 : index
    %c0_109 = arith.constant 0 : index
    %c0_110 = arith.constant 0 : index
    %160 = vector.load %arg1[%c2_108, %c0_109, %c0_110] : memref<4x16x196xbf16, #tpu.memory_space<vmem>>, vector<1x16x196xbf16>
    %161 = vector.shape_cast %160 : vector<1x16x196xbf16> to vector<16x196xbf16>
    %162 = arith.extf %161 : vector<16x196xbf16> to vector<16x196xf32>
    %c4_111 = arith.constant 4 : index
    %c2_112 = arith.constant 2 : index
    %163 = memref.load %arg2[%c4_111, %c2_112] : memref<5x4xf32, #tpu.memory_space<smem>>
    %164 = vector.broadcast %163 : f32 to vector<16x196xf32>
    %165 = arith.mulf %162, %164 : vector<16x196xf32>
    %166 = arith.addf %159, %165 : vector<16x196xf32>
    %c3_113 = arith.constant 3 : index
    %c0_114 = arith.constant 0 : index
    %c0_115 = arith.constant 0 : index
    %167 = vector.load %arg1[%c3_113, %c0_114, %c0_115] : memref<4x16x196xbf16, #tpu.memory_space<vmem>>, vector<1x16x196xbf16>
    %168 = vector.shape_cast %167 : vector<1x16x196xbf16> to vector<16x196xbf16>
    %169 = arith.extf %168 : vector<16x196xbf16> to vector<16x196xf32>
    %c4_116 = arith.constant 4 : index
    %c3_117 = arith.constant 3 : index
    %170 = memref.load %arg2[%c4_116, %c3_117] : memref<5x4xf32, #tpu.memory_space<smem>>
    %171 = vector.broadcast %170 : f32 to vector<16x196xf32>
    %172 = arith.mulf %169, %171 : vector<16x196xf32>
    %173 = arith.addf %166, %172 : vector<16x196xf32>
    %c4_118 = arith.constant 4 : index
    %174 = memref.load %arg3[%c4_118] : memref<5xf32, #tpu.memory_space<smem>>
    %175 = vector.broadcast %174 : f32 to vector<16x196xf32>
    %176 = arith.addf %173, %175 : vector<16x196xf32>
    %cst_119 = arith.constant 0.000000e+00 : f32
    %177 = vector.broadcast %cst_119 : f32 to vector<16x196xf32>
    %178 = arith.maximumf %176, %177 : vector<16x196xf32>
    %179 = arith.truncf %178 : vector<16x196xf32> to vector<16x196xbf16>
    %c4_120 = arith.constant 4 : index
    %c0_121 = arith.constant 0 : index
    %c0_122 = arith.constant 0 : index
    %180 = vector.load %arg4[%c4_120, %c0_121, %c0_122] : memref<5x196x128xbf16, #tpu.memory_space<vmem>>, vector<1x196x128xbf16>
    %181 = vector.shape_cast %180 : vector<1x196x128xbf16> to vector<196x128xbf16>
    %cst_123 = arith.constant dense<0.000000e+00> : vector<16x128xf32>
    %182 = tpu.matmul %179, %181, %cst_123 {dimension_numbers = #tpu.dot_dimension_numbers<[1], [0], [0], [1], [0, 0, 1, 1], [], []>} : vector<16x196xbf16>, vector<196x128xbf16>, vector<16x128xf32> -> vector<16x128xf32>
    %183 = arith.addf %146, %182 : vector<16x128xf32>
    %c0_124 = arith.constant 0 : index
    %c0_125 = arith.constant 0 : index
    %184 = vector.load %arg5[%c0_124, %c0_125] : memref<1x128xf32, #tpu.memory_space<vmem>>, vector<1x128xf32>
    %185 = vector.broadcast %184 : vector<1x128xf32> to vector<16x128xf32>
    %186 = arith.addf %183, %185 : vector<16x128xf32>
    %cst_126 = arith.constant 0.000000e+00 : f32
    %187 = vector.broadcast %cst_126 : f32 to vector<16x128xf32>
    %188 = arith.maximumf %186, %187 : vector<16x128xf32>
    %189 = arith.truncf %188 : vector<16x128xf32> to vector<16x128xbf16>
    %c0_127 = arith.constant 0 : index
    %c0_128 = arith.constant 0 : index
    %190 = vector.load %arg6[%c0_127, %c0_128] : memref<128x128xbf16, #tpu.memory_space<vmem>>, vector<128x128xbf16>
    %cst_129 = arith.constant dense<0.000000e+00> : vector<16x128xf32>
    %191 = tpu.matmul %189, %190, %cst_129 {dimension_numbers = #tpu.dot_dimension_numbers<[1], [0], [0], [1], [0, 0, 1, 1], [], []>} : vector<16x128xbf16>, vector<128x128xbf16>, vector<16x128xf32> -> vector<16x128xf32>
    %c0_130 = arith.constant 0 : index
    %c0_131 = arith.constant 0 : index
    %192 = vector.load %arg7[%c0_130, %c0_131] : memref<1x128xf32, #tpu.memory_space<vmem>>, vector<1x128xf32>
    %193 = vector.broadcast %192 : vector<1x128xf32> to vector<16x128xf32>
    %194 = arith.addf %191, %193 : vector<16x128xf32>
    %c0_132 = arith.constant 0 : index
    %c0_133 = arith.constant 0 : index
    %195 = vector.load %arg8[%c0_132, %c0_133] : memref<16x128xf32, #tpu.memory_space<vmem>>, vector<16x128xf32>
    tpu.vector_store %arg8[%c0_132, %c0_133], %194 {strides = array<i32>} : memref<16x128xf32, #tpu.memory_space<vmem>>, vector<16x128xf32>,
    return
  }
  func.func @transform_0(%arg0: i32) -> (i32, i32, i32) {
    %c0_i32 = arith.constant 0 : i32
    %c0_i32_0 = arith.constant 0 : i32
    %c0_i32_1 = arith.constant 0 : i32
    return %c0_i32, %arg0, %c0_i32_0 : i32, i32, i32
  }
  func.func @transform_1(%arg0: i32) -> (i32, i32) {
    %c0_i32 = arith.constant 0 : i32
    %c0_i32_0 = arith.constant 0 : i32
    %c0_i32_1 = arith.constant 0 : i32
    return %c0_i32, %c0_i32_0 : i32, i32
  }
  func.func @transform_2(%arg0: i32) -> i32 {
    %c0_i32 = arith.constant 0 : i32
    %c0_i32_0 = arith.constant 0 : i32
    return %c0_i32 : i32
  }
  func.func @transform_3(%arg0: i32) -> (i32, i32, i32) {
    %c0_i32 = arith.constant 0 : i32
    %c0_i32_0 = arith.constant 0 : i32
    %c0_i32_1 = arith.constant 0 : i32
    %c0_i32_2 = arith.constant 0 : i32
    return %c0_i32, %c0_i32_0, %c0_i32_1 : i32, i32, i32
  }
  func.func @transform_4(%arg0: i32) -> (i32, i32) {
    %c0_i32 = arith.constant 0 : i32
    %c0_i32_0 = arith.constant 0 : i32
    %c0_i32_1 = arith.constant 0 : i32
    return %c0_i32, %c0_i32_0 : i32, i32
  }
  func.func @transform_5(%arg0: i32) -> (i32, i32) {
    %c0_i32 = arith.constant 0 : i32
    %c0_i32_0 = arith.constant 0 : i32
    %c0_i32_1 = arith.constant 0 : i32
    return %c0_i32, %c0_i32_0 : i32, i32
  }
  func.func @transform_6(%arg0: i32) -> (i32, i32) {
    %c0_i32 = arith.constant 0 : i32
    %c0_i32_0 = arith.constant 0 : i32
    %c0_i32_1 = arith.constant 0 : i32
    return %c0_i32, %c0_i32_0 : i32, i32
  }
  func.func @transform_7(%arg0: i32) -> (i32, i32) {
    %c0_i32 = arith.constant 0 : i32
    %c0_i32_0 = arith.constant 0 : i32
    return %arg0, %c0_i32 : i32, i32
  }
}

</mosaic_0001>

<llo_original>
// kernel: sarda_forward.1
$region0: #{sarda_forward.1}
  #allocation0 [shape = 'u32[]', space=smem, size = 0x4, offset = 0x4, fixed_abs, tag = 'smem constant byte address 0x4 - core index']
  #allocation1 [shape = 'u32[144,128]{1,0:T(1,128)}', space=vmem, size = 0x12000, scoped, tag = 'internal scratch']
  %s0 = inlined_call_operand.vmem [shape: bf16[4,16,196], index: 0, kind: input, shape index: {}]
  %s1 = inlined_call_operand.vmem [shape: f32[5,4], index: 1, kind: input, shape index: {}]
  %s2 = inlined_call_operand.vmem [shape: f32[5], index: 2, kind: input, shape index: {}]
  %s3 = inlined_call_operand.vmem [shape: bf16[5,196,128], index: 3, kind: input, shape index: {}]
  %s4 = inlined_call_operand.vmem [shape: f32[1,128], index: 4, kind: input, shape index: {}]
  %s5 = inlined_call_operand.vmem [shape: bf16[128,128], index: 5, kind: input, shape index: {}]
  %s6 = inlined_call_operand.vmem [shape: f32[1,128], index: 6, kind: input, shape index: {}]
  %s7 = inlined_call_operand.vmem [shape: f32[16,128], index: 7, kind: output, shape index: {}]
  %s8 = sld [smem:[#allocation0]]
  $region46: #{sarda_forward.1} parent=0
    _
  %s10 = ssub.s32 1, %s8
  %s11 = scalar_select 0, %s10, %s8
  $region1: #{sarda_forward.1} parent=0
    #allocation2 [shape = 'u8[4096]{0}', space=smem, size = 0x1000, scoped, tag = 'input window, operand 1, single buffered']
    #allocation3 [shape = 's32[1]{0}', space=sflag, size = 0x4, scoped, tag = 'scoped memory for sarda_forward.1']
    #allocation4 [shape = 'u8[512]{0}', space=smem, size = 0x200, scoped, tag = 'input window, operand 2, single buffered']
    #allocation5 [shape = 's32[1]{0}', space=sflag, size = 0x4, scoped, tag = 'scoped memory for sarda_forward.1']
    %12 = vsyncpa [#allocation3], 0
    %13 = vsyncpa [#allocation5], 0
    // Predicated region
    $region2: #{sarda_forward.1} parent=1 // pred_check
      _
    $region3: #{sarda_forward.1} parent=1 // pred_check_branch
      %15 = sbr.rel (0) target = $region5
    $region4: #{sarda_forward.1} parent=1 // pred_region
      _
    $region5: #{sarda_forward.1} parent=1 // pred_fallthru
      _
    // Predicated region
    $region6: #{sarda_forward.1} parent=1 // pred_check
      _
    $region7: #{sarda_forward.1} parent=1 // pred_check_branch
      %17 = sbr.rel (0) target = $region9
    $region8: #{sarda_forward.1} parent=1 // pred_region
      %s19 = ssub.s32 128, 128
      %20 = vsyncadd [#allocation3], %s19
      %s22 = sshll.u32 %s1, 4
      %s23 = int_to_ptr.vmem [resolvable:$true] %s22
      %25 = dma.vmem_to_smem %s23, 128, [#allocation2], [#allocation3]
    $region9: #{sarda_forward.1} parent=1 // pred_fallthru
      _
    // Predicated region
    $region10: #{sarda_forward.1} parent=1 // pred_check
      _
    $region11: #{sarda_forward.1} parent=1 // pred_check_branch
      %27 = sbr.rel (0) target = $region13
    $region12: #{sarda_forward.1} parent=1 // pred_region
      %s29 = ssub.s32 16, 16
      %30 = vsyncadd [#allocation5], %s29
      %s32 = sshll.u32 %s2, 4
      %s33 = int_to_ptr.vmem [resolvable:$true] %s32
      %35 = dma.vmem_to_smem %s33, 16, [#allocation4], [#allocation5]
    $region13: #{sarda_forward.1} parent=1 // pred_fallthru
      _
    // Predicated region
    $region14: #{sarda_forward.1} parent=1 // pred_check
      _
    $region15: #{sarda_forward.1} parent=1 // pred_check_branch
      %37 = sbr.rel (0) target = $region17
    $region16: #{sarda_forward.1} parent=1 // pred_region
      _
    $region17: #{sarda_forward.1} parent=1 // pred_fallthru
      _
    // Predicated region
    $region18: #{sarda_forward.1} parent=1 // pred_check
      _
    $region19: #{sarda_forward.1} parent=1 // pred_check_branch
      %39 = sbr.rel (0) target = $region21
    $region20: #{sarda_forward.1} parent=1 // pred_region
      _
    $region21: #{sarda_forward.1} parent=1 // pred_fallthru
      _
    // Predicated region
    $region22: #{sarda_forward.1} parent=1 // pred_check
      _
    $region23: #{sarda_forward.1} parent=1 // pred_check_branch
      %41 = sbr.rel (0) target = $region25
    $region24: #{sarda_forward.1} parent=1 // pred_region
      _
    $region25: #{sarda_forward.1} parent=1 // pred_fallthru
      _
    // Predicated region
    $region26: #{sarda_forward.1} parent=1 // pred_check
      _
    $region27: #{sarda_forward.1} parent=1 // pred_check_branch
      %43 = sbr.rel (0) target = $region29
    $region28: #{sarda_forward.1} parent=1 // pred_region
      _
    $region29: #{sarda_forward.1} parent=1 // pred_fallthru
      _
    // Predicated region
    $region30: #{sarda_forward.1} parent=1 // pred_check
      _
    $region31: #{sarda_forward.1} parent=1 // pred_check_branch
      %45 = sbr.rel (0) target = $region33
    $region32: #{sarda_forward.1} parent=1 // pred_region
      %46 = dma.done [#allocation3], 128
    $region33: #{sarda_forward.1} parent=1 // pred_fallthru
      _
    // Predicated region
    $region34: #{sarda_forward.1} parent=1 // pred_check
      _
    $region35: #{sarda_forward.1} parent=1 // pred_check_branch
      %48 = sbr.rel (0) target = $region37
    $region36: #{sarda_forward.1} parent=1 // pred_region
      %49 = dma.done [#allocation5], 16
    $region37: #{sarda_forward.1} parent=1 // pred_fallthru
      _
    %50 = sfence
    %v52 = vld [vmem:[%s0] sm:$0xff]
    %v53 = vld [vmem:[%s0 + $0x8] sm:$0xff]
    %v54 = vunpack.c.l.bf16 %v52
    %v55 = vunpack.c.h.bf16 %v52
    %v56 = vunpack.c.l.bf16 %v53
    %v57 = vunpack.c.h.bf16 %v53
    %s58 = sld [smem:[#allocation2]]
    %v59 = vstv %s58
    %v60 = vmul.f32 %v54, %v59
    %v61 = vmul.f32 %v55, %v59
    %v62 = vmul.f32 %v56, %v59
    %v63 = vmul.f32 %v57, %v59
    %s64 = scalar_lea.vmem %s0, 16
    %v65 = vld [vmem:[%s64] sm:$0xff]
    %v66 = vld [vmem:[%s64 + $0x8] sm:$0xff]
    %v67 = vunpack.c.l.bf16 %v65
    %v68 = vunpack.c.h.bf16 %v65
    %v69 = vunpack.c.l.bf16 %v66
    %v70 = vunpack.c.h.bf16 %v66
    %s71 = sld [smem:[#allocation2 + $0x1]]
    %v72 = vstv %s71
    %v73 = vmul.f32 %v67, %v72
    %v74 = vmul.f32 %v68, %v72
    %v75 = vmul.f32 %v69, %v72
    %v76 = vmul.f32 %v70, %v72
    %v77 = vadd.f32 %v60, %v73
    %v78 = vadd.f32 %v61, %v74
    %v79 = vadd.f32 %v62, %v75
    %v80 = vadd.f32 %v63, %v76
    %s81 = scalar_lea.vmem %s0, 32
    %v82 = vld [vmem:[%s81] sm:$0xff]
    %v83 = vld [vmem:[%s81 + $0x8] sm:$0xff]
    %v84 = vunpack.c.l.bf16 %v82
    %v85 = vunpack.c.h.bf16 %v82
    %v86 = vunpack.c.l.bf16 %v83
    %v87 = vunpack.c.h.bf16 %v83
    %s88 = sld [smem:[#allocation2 + $0x2]]
    %v89 = vstv %s88
    %v90 = vmul.f32 %v84, %v89
    %v91 = vmul.f32 %v85, %v89
    %v92 = vmul.f32 %v86, %v89
    %v93 = vmul.f32 %v87, %v89
    %v94 = vadd.f32 %v77, %v90
    %v95 = vadd.f32 %v78, %v91
    %v96 = vadd.f32 %v79, %v92
    %v97 = vadd.f32 %v80, %v93
    %s98 = scalar_lea.vmem %s0, 48
    %v99 = vld [vmem:[%s98] sm:$0xff]
    %v100 = vld [vmem:[%s98 + $0x8] sm:$0xff]
    %v101 = vunpack.c.l.bf16 %v99
    %v102 = vunpack.c.h.bf16 %v99
    %v103 = vunpack.c.l.bf16 %v100
    %v104 = vunpack.c.h.bf16 %v100
    %s105 = sld [smem:[#allocation2 + $0x3]]
    %v106 = vstv %s105
    %v107 = vmul.f32 %v101, %v106
    %v108 = vmul.f32 %v102, %v106
    %v109 = vmul.f32 %v103, %v106
    %v110 = vmul.f32 %v104, %v106
    %v111 = vadd.f32 %v94, %v107
    %v112 = vadd.f32 %v95, %v108
    %v113 = vadd.f32 %v96, %v109
    %v114 = vadd.f32 %v97, %v110
    %s115 = sld [smem:[#allocation4]]
    %v116 = vstv %s115
    %v117 = vadd.f32 %v111, %v116
    %v118 = vadd.f32 %v112, %v116
    %v119 = vadd.f32 %v113, %v116
    %v120 = vadd.f32 %v114, %v116
    %v121 = vmax.f32 %v117, 0.0
    %v122 = vmax.f32 %v118, 0.0
    %v123 = vmax.f32 %v119, 0.0
    %v124 = vmax.f32 %v120, 0.0
    %v125 = vpack.c.bf16 %v123, %v121
    %v126 = vpack.c.bf16 %v124, %v122
    %v127 = vld [vmem:[%s3] sm:$0xf]
    %v128 = vld [vmem:[%s3 + $0x4] sm:$0xf]
    %v129 = vld [vmem:[%s3 + $0x8] sm:$0xf]
    %v130 = vld [vmem:[%s3 + $0xc] sm:$0xf]
    %v131 = vld [vmem:[%s3 + $0x10] sm:$0xf]
    %v132 = vld [vmem:[%s3 + $0x14] sm:$0xf]
    %v133 = vld [vmem:[%s3 + $0x18] sm:$0xf]
    %v134 = vld [vmem:[%s3 + $0x1c] sm:$0xf]
    %v135 = vld [vmem:[%s3 + $0x20] sm:$0xf]
    %v136 = vld [vmem:[%s3 + $0x24] sm:$0xf]
    %v137 = vld [vmem:[%s3 + $0x28] sm:$0xf]
    %v138 = vld [vmem:[%s3 + $0x2c] sm:$0xf]
    %v139 = vld [vmem:[%s3 + $0x30] sm:$0xf]
    %v140 = vld [vmem:[%s3 + $0x34] sm:$0xf]
    %v141 = vld [vmem:[%s3 + $0x38] sm:$0xf]
    %v142 = vld [vmem:[%s3 + $0x3c] sm:$0xf]
    %v143 = vld [vmem:[%s3 + $0x40] sm:$0xf]
    %v144 = vld [vmem:[%s3 + $0x44] sm:$0xf]
    %v145 = vld [vmem:[%s3 + $0x48] sm:$0xf]
    %v146 = vld [vmem:[%s3 + $0x4c] sm:$0xf]
    %v147 = vld [vmem:[%s3 + $0x50] sm:$0xf]
    %v148 = vld [vmem:[%s3 + $0x54] sm:$0xf]
    %v149 = vld [vmem:[%s3 + $0x58] sm:$0xf]
    %v150 = vld [vmem:[%s3 + $0x5c] sm:$0xf]
    %v151 = vld [vmem:[%s3 + $0x60] sm:$0x3]
    %s152 = sld [smem:[#allocation2 + $0x80]]
    %v153 = vstv %s152
    %v154 = vmul.f32 %v54, %v153
    %v155 = vmul.f32 %v55, %v153
    %v156 = vmul.f32 %v56, %v153
    %v157 = vmul.f32 %v57, %v153
    %s158 = sld [smem:[#allocation2 + $0x81]]
    %v159 = vstv %s158
    %v160 = vmul.f32 %v67, %v159
    %v161 = vmul.f32 %v68, %v159
    %v162 = vmul.f32 %v69, %v159
    %v163 = vmul.f32 %v70, %v159
    %v164 = vadd.f32 %v154, %v160
    %v165 = vadd.f32 %v155, %v161
    %v166 = vadd.f32 %v156, %v162
    %v167 = vadd.f32 %v157, %v163
    %s168 = sld [smem:[#allocation2 + $0x82]]
    %v169 = vstv %s168
    %v170 = vmul.f32 %v84, %v169
    %v171 = vmul.f32 %v85, %v169
    %v172 = vmul.f32 %v86, %v169
    %v173 = vmul.f32 %v87, %v169
    %v174 = vadd.f32 %v164, %v170
    %v175 = vadd.f32 %v165, %v171
    %v176 = vadd.f32 %v166, %v172
    %v177 = vadd.f32 %v167, %v173
    %s178 = sld [smem:[#allocation2 + $0x83]]
    %v179 = vstv %s178
    %v180 = vmul.f32 %v101, %v179
    %v181 = vmul.f32 %v102, %v179
    %v182 = vmul.f32 %v103, %v179
    %v183 = vmul.f32 %v104, %v179
    %v184 = vadd.f32 %v174, %v180
    %v185 = vadd.f32 %v175, %v181
    %v186 = vadd.f32 %v176, %v182
    %v187 = vadd.f32 %v177, %v183
    %s188 = sld [smem:[#allocation4 + $0x1]]
    %v189 = vstv %s188
    %v190 = vadd.f32 %v184, %v189
    %v191 = vadd.f32 %v185, %v189
    %v192 = vadd.f32 %v186, %v189
    %v193 = vadd.f32 %v187, %v189
    %v194 = vmax.f32 %v190, 0.0
    %v195 = vmax.f32 %v191, 0.0
    %v196 = vmax.f32 %v192, 0.0
    %v197 = vmax.f32 %v193, 0.0
    %v198 = vpack.c.bf16 %v196, %v194
    %v199 = vpack.c.bf16 %v197, %v195
    %s200 = scalar_lea.vmem %s3, 100
    %v201 = vld [vmem:[%s200] sm:$0xf]
    %v202 = vld [vmem:[%s200 + $0x4] sm:$0xf]
    %v203 = vld [vmem:[%s200 + $0x8] sm:$0xf]
    %v204 = vld [vmem:[%s200 + $0xc] sm:$0xf]
    %v205 = vld [vmem:[%s200 + $0x10] sm:$0xf]
    %v206 = vld [vmem:[%s200 + $0x14] sm:$0xf]
    %v207 = vld [vmem:[%s200 + $0x18] sm:$0xf]
    %v208 = vld [vmem:[%s200 + $0x1c] sm:$0xf]
    %v209 = vld [vmem:[%s200 + $0x20] sm:$0xf]
    %v210 = vld [vmem:[%s200 + $0x24] sm:$0xf]
    %v211 = vld [vmem:[%s200 + $0x28] sm:$0xf]
    %v212 = vld [vmem:[%s200 + $0x2c] sm:$0xf]
    %v213 = vld [vmem:[%s200 + $0x30] sm:$0xf]
    %v214 = vld [vmem:[%s200 + $0x34] sm:$0xf]
    %v215 = vld [vmem:[%s200 + $0x38] sm:$0xf]
    %v216 = vld [vmem:[%s200 + $0x3c] sm:$0xf]
    %v217 = vld [vmem:[%s200 + $0x40] sm:$0xf]
    %v218 = vld [vmem:[%s200 + $0x44] sm:$0xf]
    %v219 = vld [vmem:[%s200 + $0x48] sm:$0xf]
    %v220 = vld [vmem:[%s200 + $0x4c] sm:$0xf]
    %v221 = vld [vmem:[%s200 + $0x50] sm:$0xf]
    %v222 = vld [vmem:[%s200 + $0x54] sm:$0xf]
    %v223 = vld [vmem:[%s200 + $0x58] sm:$0xf]
    %v224 = vld [vmem:[%s200 + $0x5c] sm:$0xf]
    %v225 = vld [vmem:[%s200 + $0x60] sm:$0x3]
    %v251 = vunpack.c.l.b16 %v201
    %v252 = vunpack.c.l.b16 %v202
    %v253 = vunpack.c.l.b16 %v203
    %v254 = vunpack.c.l.b16 %v204
    %v255 = vunpack.c.l.b16 %v205
    %v256 = vunpack.c.l.b16 %v206
    %v257 = vunpack.c.l.b16 %v207
    %v258 = vunpack.c.l.b16 %v208
    %v259 = vunpack.c.l.b16 %v209
    %v260 = vunpack.c.l.b16 %v210
    %v261 = vunpack.c.l.b16 %v211
    %v262 = vunpack.c.l.b16 %v212
    %v263 = vunpack.c.l.b16 %v213
    %v264 = vunpack.c.l.b16 %v214
    %v265 = vunpack.c.l.b16 %v215
    %v266 = vunpack.c.l.b16 %v216
    %v267 = vunpack.c.l.b16 %v217
    %v268 = vunpack.c.l.b16 %v218
    %v269 = vunpack.c.l.b16 %v219
    %v270 = vunpack.c.l.b16 %v220
    %v271 = vunpack.c.l.b16 %v221
    %v272 = vunpack.c.l.b16 %v222
    %v273 = vunpack.c.l.b16 %v223
    %v274 = vunpack.c.l.b16 %v224
    %v275 = vunpack.c.l.b16 %v225
    %v276 = vpack.c.b16 %v252, %v251
    %v277 = vpack.c.b16 %v254, %v253
    %v278 = vpack.c.b16 %v256, %v255
    %v279 = vpack.c.b16 %v258, %v257
    %v280 = vpack.c.b16 %v260, %v259
    %v281 = vpack.c.b16 %v262, %v261
    %v282 = vpack.c.b16 %v264, %v263
    %v283 = vpack.c.b16 %v266, %v265
    %v284 = vpack.c.b16 %v268, %v267
    %v285 = vpack.c.b16 %v270, %v269
    %v286 = vpack.c.b16 %v272, %v271
    %v287 = vpack.c.b16 %v274, %v273
    %v288 = vpack.c.b16 %v275, %v275
    %vm301 = vcmask 556032
    %v303 = vsel %vm301, %v199, 0
    %vm305 = vcmask 1041408
    %v307 = vsel %vm305, %v288, 0
    %309 = vmatprep.subr.bf16.mxu0 0
    %310 = vmatpush1.bf16.msra.mxu0 %v276
    %311 = vmatprep.subr.bf16.mxu0 0
    %312 = vmatpush1.bf16.msra.mxu0 %v277
    %313 = vmatprep.subr.bf16.mxu0 0
    %314 = vmatpush1.bf16.msra.mxu0 %v278
    %315 = vmatprep.subr.bf16.mxu0 0
    %316 = vmatpush1.bf16.msra.mxu0 %v279
    %317 = vmatprep.subr.bf16.mxu0 0
    %318 = vmatpush1.bf16.msra.mxu0 %v280
    %319 = vmatprep.subr.bf16.mxu0 0
    %320 = vmatpush1.bf16.msra.mxu0 %v281
    %321 = vmatprep.subr.bf16.mxu0 0
    %322 = vmatpush1.bf16.msra.mxu0 %v282
    %323 = vmatprep.subr.bf16.mxu0 0
    %324 = vmatpush1.bf16.msra.mxu0 %v283
    %325 = vmatprep.subr.bf16.mxu0 0
    %326 = vmatpush1.bf16.msra.mxu0 %v284
    %327 = vmatprep.subr.bf16.mxu0 0
    %328 = vmatpush1.bf16.msra.mxu0 %v285
    %329 = vmatprep.subr.bf16.mxu0 0
    %330 = vmatpush1.bf16.msra.mxu0 %v286
    %331 = vmatprep.subr.bf16.mxu0 0
    %332 = vmatpush1.bf16.msra.mxu0 %v287
    %333 = vmatprep.subr.bf16.mxu0 0
    %334 = vmatpush1.bf16.msra.mxu0 %v307
    %335 = vmatprep.subr.bf16.mxu0 0
    %336 = vmatpush1.bf16.msra.mxu0 0
    %337 = vmatprep.subr.bf16.mxu0 0
    %338 = vmatpush1.bf16.msra.mxu0 0
    %339 = vmatprep.subr.bf16.mxu0 0
    %340 = vmatpush1.bf16.msra.mxu0 0
    %341 = vmatprep.mubr.bf16.mxu0 %v303
    %342 = vmatmul.mubr.bf16.gmra.mrb[0].mxu0 %v198
    %v343 = vpop.f32.mrb[0].mxu0
    %v344 = vadd.f32 0.0, %v343
    %v345 = vpop.f32.mrb[0].mxu0
    %v346 = vpop.f32.mrb[0].mxu0
    %v347 = vadd.f32 0.0, %v346
    %v348 = vpop.f32.mrb[0].mxu0
    %349 = vdwg.mxu0
    %v375 = vunpack.c.l.b16 %v127
    %v376 = vunpack.c.l.b16 %v128
    %v377 = vunpack.c.l.b16 %v129
    %v378 = vunpack.c.l.b16 %v130
    %v379 = vunpack.c.l.b16 %v131
    %v380 = vunpack.c.l.b16 %v132
    %v381 = vunpack.c.l.b16 %v133
    %v382 = vunpack.c.l.b16 %v134
    %v383 = vunpack.c.l.b16 %v135
    %v384 = vunpack.c.l.b16 %v136
    %v385 = vunpack.c.l.b16 %v137
    %v386 = vunpack.c.l.b16 %v138
    %v387 = vunpack.c.l.b16 %v139
    %v388 = vunpack.c.l.b16 %v140
    %v389 = vunpack.c.l.b16 %v141
    %v390 = vunpack.c.l.b16 %v142
    %v391 = vunpack.c.l.b16 %v143
    %v392 = vunpack.c.l.b16 %v144
    %v393 = vunpack.c.l.b16 %v145
    %v394 = vunpack.c.l.b16 %v146
    %v395 = vunpack.c.l.b16 %v147
    %v396 = vunpack.c.l.b16 %v148
    %v397 = vunpack.c.l.b16 %v149
    %v398 = vunpack.c.l.b16 %v150
    %v399 = vunpack.c.l.b16 %v151
    %v400 = vpack.c.b16 %v376, %v375
    %v401 = vpack.c.b16 %v378, %v377
    %v402 = vpack.c.b16 %v380, %v379
    %v403 = vpack.c.b16 %v382, %v381
    %v404 = vpack.c.b16 %v384, %v383
    %v405 = vpack.c.b16 %v386, %v385
    %v406 = vpack.c.b16 %v388, %v387
    %v407 = vpack.c.b16 %v390, %v389
    %v408 = vpack.c.b16 %v392, %v391
    %v409 = vpack.c.b16 %v394, %v393
    %v410 = vpack.c.b16 %v396, %v395
    %v411 = vpack.c.b16 %v398, %v397
    %v412 = vpack.c.b16 %v399, %v399
    %v426 = vsel %vm301, %v126, 0
    %v429 = vsel %vm305, %v412, 0
    %431 = vmatprep.subr.bf16.mxu0 0
    %432 = vmatpush1.bf16.msra.mxu0 %v400
    %433 = vmatprep.subr.bf16.mxu0 0
    %434 = vmatpush1.bf16.msra.mxu0 %v401
    %435 = vmatprep.subr.bf16.mxu0 0
    %436 = vmatpush1.bf16.msra.mxu0 %v402
    %437 = vmatprep.subr.bf16.mxu0 0
    %438 = vmatpush1.bf16.msra.mxu0 %v403
    %439 = vmatprep.subr.bf16.mxu0 0
    %440 = vmatpush1.bf16.msra.mxu0 %v404
    %441 = vmatprep.subr.bf16.mxu0 0
    %442 = vmatpush1.bf16.msra.mxu0 %v405
    %443 = vmatprep.subr.bf16.mxu0 0
    %444 = vmatpush1.bf16.msra.mxu0 %v406
    %445 = vmatprep.subr.bf16.mxu0 0
    %446 = vmatpush1.bf16.msra.mxu0 %v407
    %447 = vmatprep.subr.bf16.mxu0 0
    %448 = vmatpush1.bf16.msra.mxu0 %v408
    %449 = vmatprep.subr.bf16.mxu0 0
    %450 = vmatpush1.bf16.msra.mxu0 %v409
    %451 = vmatprep.subr.bf16.mxu0 0
    %452 = vmatpush1.bf16.msra.mxu0 %v410
    %453 = vmatprep.subr.bf16.mxu0 0
    %454 = vmatpush1.bf16.msra.mxu0 %v411
    %455 = vmatprep.subr.bf16.mxu0 0
    %456 = vmatpush1.bf16.msra.mxu0 %v429
    %457 = vmatprep.subr.bf16.mxu0 0
    %458 = vmatpush1.bf16.msra.mxu0 0
    %459 = vmatprep.subr.bf16.mxu0 0
    %460 = vmatpush1.bf16.msra.mxu0 0
    %461 = vmatprep.subr.bf16.mxu0 0
    %462 = vmatpush1.bf16.msra.mxu0 0
    %463 = vmatprep.mubr.bf16.mxu0 %v426
    %464 = vmatmul.mubr.bf16.gmra.mrb[0].mxu0 %v125
    %v465 = vpop.f32.mrb[0].mxu0
    %v466 = vadd.f32 %v344, %v465
    %v467 = vpop.f32.mrb[0].mxu0
    %v468 = vpop.f32.mrb[0].mxu0
    %v469 = vadd.f32 %v347, %v468
    %v470 = vpop.f32.mrb[0].mxu0
    %471 = vdwg.mxu0
    %s472 = sld [smem:[#allocation2 + $0x100]]
    %v473 = vstv %s472
    %v474 = vmul.f32 %v54, %v473
    %v475 = vmul.f32 %v55, %v473
    %v476 = vmul.f32 %v56, %v473
    %v477 = vmul.f32 %v57, %v473
    %s478 = sld [smem:[#allocation2 + $0x101]]
    %v479 = vstv %s478
    %v480 = vmul.f32 %v67, %v479
    %v481 = vmul.f32 %v68, %v479
    %v482 = vmul.f32 %v69, %v479
    %v483 = vmul.f32 %v70, %v479
    %v484 = vadd.f32 %v474, %v480
    %v485 = vadd.f32 %v475, %v481
    %v486 = vadd.f32 %v476, %v482
    %v487 = vadd.f32 %v477, %v483
    %s488 = sld [smem:[#allocation2 + $0x102]]
    %v489 = vstv %s488
    %v490 = vmul.f32 %v84, %v489
    %v491 = vmul.f32 %v85, %v489
    %v492 = vmul.f32 %v86, %v489
    %v493 = vmul.f32 %v87, %v489
    %v494 = vadd.f32 %v484, %v490
    %v495 = vadd.f32 %v485, %v491
    %v496 = vadd.f32 %v486, %v492
    %v497 = vadd.f32 %v487, %v493
    %s498 = sld [smem:[#allocation2 + $0x103]]
    %v499 = vstv %s498
    %v500 = vmul.f32 %v101, %v499
    %v501 = vmul.f32 %v102, %v499
    %v502 = vmul.f32 %v103, %v499
    %v503 = vmul.f32 %v104, %v499
    %v504 = vadd.f32 %v494, %v500
    %v505 = vadd.f32 %v495, %v501
    %v506 = vadd.f32 %v496, %v502
    %v507 = vadd.f32 %v497, %v503
    %s508 = sld [smem:[#allocation4 + $0x2]]
    %v509 = vstv %s508
    %v510 = vadd.f32 %v504, %v509
    %v511 = vadd.f32 %v505, %v509
    %v512 = vadd.f32 %v506, %v509
    %v513 = vadd.f32 %v507, %v509
    %v514 = vmax.f32 %v510, 0.0
    %v515 = vmax.f32 %v511, 0.0
    %v516 = vmax.f32 %v512, 0.0
    %v517 = vmax.f32 %v513, 0.0
    %v518 = vpack.c.bf16 %v516, %v514
    %v519 = vpack.c.bf16 %v517, %v515
    %s520 = scalar_lea.vmem %s3, 200
    %v521 = vld [vmem:[%s520] sm:$0xf]
    %v522 = vld [vmem:[%s520 + $0x4] sm:$0xf]
    %v523 = vld [vmem:[%s520 + $0x8] sm:$0xf]
    %v524 = vld [vmem:[%s520 + $0xc] sm:$0xf]
    %v525 = vld [vmem:[%s520 + $0x10] sm:$0xf]
    %v526 = vld [vmem:[%s520 + $0x14] sm:$0xf]
    %v527 = vld [vmem:[%s520 + $0x18] sm:$0xf]
    %v528 = vld [vmem:[%s520 + $0x1c] sm:$0xf]
    %v529 = vld [vmem:[%s520 + $0x20] sm:$0xf]
    %v530 = vld [vmem:[%s520 + $0x24] sm:$0xf]
    %v531 = vld [vmem:[%s520 + $0x28] sm:$0xf]
    %v532 = vld [vmem:[%s520 + $0x2c] sm:$0xf]
    %v533 = vld [vmem:[%s520 + $0x30] sm:$0xf]
    %v534 = vld [vmem:[%s520 + $0x34] sm:$0xf]
    %v535 = vld [vmem:[%s520 + $0x38] sm:$0xf]
    %v536 = vld [vmem:[%s520 + $0x3c] sm:$0xf]
    %v537 = vld [vmem:[%s520 + $0x40] sm:$0xf]
    %v538 = vld [vmem:[%s520 + $0x44] sm:$0xf]
    %v539 = vld [vmem:[%s520 + $0x48] sm:$0xf]
    %v540 = vld [vmem:[%s520 + $0x4c] sm:$0xf]
    %v541 = vld [vmem:[%s520 + $0x50] sm:$0xf]
    %v542 = vld [vmem:[%s520 + $0x54] sm:$0xf]
    %v543 = vld [vmem:[%s520 + $0x58] sm:$0xf]
    %v544 = vld [vmem:[%s520 + $0x5c] sm:$0xf]
    %v545 = vld [vmem:[%s520 + $0x60] sm:$0x3]
    %v571 = vunpack.c.l.b16 %v521
    %v572 = vunpack.c.l.b16 %v522
    %v573 = vunpack.c.l.b16 %v523
    %v574 = vunpack.c.l.b16 %v524
    %v575 = vunpack.c.l.b16 %v525
    %v576 = vunpack.c.l.b16 %v526
    %v577 = vunpack.c.l.b16 %v527
    %v578 = vunpack.c.l.b16 %v528
    %v579 = vunpack.c.l.b16 %v529
    %v580 = vunpack.c.l.b16 %v530
    %v581 = vunpack.c.l.b16 %v531
    %v582 = vunpack.c.l.b16 %v532
    %v583 = vunpack.c.l.b16 %v533
    %v584 = vunpack.c.l.b16 %v534
    %v585 = vunpack.c.l.b16 %v535
    %v586 = vunpack.c.l.b16 %v536
    %v587 = vunpack.c.l.b16 %v537
    %v588 = vunpack.c.l.b16 %v538
    %v589 = vunpack.c.l.b16 %v539
    %v590 = vunpack.c.l.b16 %v540
    %v591 = vunpack.c.l.b16 %v541
    %v592 = vunpack.c.l.b16 %v542
    %v593 = vunpack.c.l.b16 %v543
    %v594 = vunpack.c.l.b16 %v544
    %v595 = vunpack.c.l.b16 %v545
    %v596 = vpack.c.b16 %v572, %v571
    %v597 = vpack.c.b16 %v574, %v573
    %v598 = vpack.c.b16 %v576, %v575
    %v599 = vpack.c.b16 %v578, %v577
    %v600 = vpack.c.b16 %v580, %v579
    %v601 = vpack.c.b16 %v582, %v581
    %v602 = vpack.c.b16 %v584, %v583
    %v603 = vpack.c.b16 %v586, %v585
    %v604 = vpack.c.b16 %v588, %v587
    %v605 = vpack.c.b16 %v590, %v589
    %v606 = vpack.c.b16 %v592, %v591
    %v607 = vpack.c.b16 %v594, %v593
    %v608 = vpack.c.b16 %v595, %v595
    %v622 = vsel %vm301, %v519, 0
    %v625 = vsel %vm305, %v608, 0
    %627 = vmatprep.subr.bf16.mxu0 0
    %628 = vmatpush1.bf16.msra.mxu0 %v596
    %629 = vmatprep.subr.bf16.mxu0 0
    %630 = vmatpush1.bf16.msra.mxu0 %v597
    %631 = vmatprep.subr.bf16.mxu0 0
    %632 = vmatpush1.bf16.msra.mxu0 %v598
    %633 = vmatprep.subr.bf16.mxu0 0
    %634 = vmatpush1.bf16.msra.mxu0 %v599
    %635 = vmatprep.subr.bf16.mxu0 0
    %636 = vmatpush1.bf16.msra.mxu0 %v600
    %637 = vmatprep.subr.bf16.mxu0 0
    %638 = vmatpush1.bf16.msra.mxu0 %v601
    %639 = vmatprep.subr.bf16.mxu0 0
    %640 = vmatpush1.bf16.msra.mxu0 %v602
    %641 = vmatprep.subr.bf16.mxu0 0
    %642 = vmatpush1.bf16.msra.mxu0 %v603
    %643 = vmatprep.subr.bf16.mxu0 0
    %644 = vmatpush1.bf16.msra.mxu0 %v604
    %645 = vmatprep.subr.bf16.mxu0 0
    %646 = vmatpush1.bf16.msra.mxu0 %v605
    %647 = vmatprep.subr.bf16.mxu0 0
    %648 = vmatpush1.bf16.msra.mxu0 %v606
    %649 = vmatprep.subr.bf16.mxu0 0
    %650 = vmatpush1.bf16.msra.mxu0 %v607
    %651 = vmatprep.subr.bf16.mxu0 0
    %652 = vmatpush1.bf16.msra.mxu0 %v625
    %653 = vmatprep.subr.bf16.mxu0 0
    %654 = vmatpush1.bf16.msra.mxu0 0
    %655 = vmatprep.subr.bf16.mxu0 0
    %656 = vmatpush1.bf16.msra.mxu0 0
    %657 = vmatprep.subr.bf16.mxu0 0
    %658 = vmatpush1.bf16.msra.mxu0 0
    %659 = vmatprep.mubr.bf16.mxu0 %v622
    %660 = vmatmul.mubr.bf16.gmra.mrb[0].mxu0 %v518
    %v661 = vpop.f32.mrb[0].mxu0
    %v662 = vadd.f32 0.0, %v661
    %v663 = vpop.f32.mrb[0].mxu0
    %v664 = vpop.f32.mrb[0].mxu0
    %v665 = vadd.f32 0.0, %v664
    %v666 = vpop.f32.mrb[0].mxu0
    %667 = vdwg.mxu0
    %v668 = vadd.f32 %v466, %v662
    %v669 = vadd.f32 %v469, %v665
    %s670 = sld [smem:[#allocation2 + $0x180]]
    %v671 = vstv %s670
    %v672 = vmul.f32 %v54, %v671
    %v673 = vmul.f32 %v55, %v671
    %v674 = vmul.f32 %v56, %v671
    %v675 = vmul.f32 %v57, %v671
    %s676 = sld [smem:[#allocation2 + $0x181]]
    %v677 = vstv %s676
    %v678 = vmul.f32 %v67, %v677
    %v679 = vmul.f32 %v68, %v677
    %v680 = vmul.f32 %v69, %v677
    %v681 = vmul.f32 %v70, %v677
    %v682 = vadd.f32 %v672, %v678
    %v683 = vadd.f32 %v673, %v679
    %v684 = vadd.f32 %v674, %v680
    %v685 = vadd.f32 %v675, %v681
    %s686 = sld [smem:[#allocation2 + $0x182]]
    %v687 = vstv %s686
    %v688 = vmul.f32 %v84, %v687
    %v689 = vmul.f32 %v85, %v687
    %v690 = vmul.f32 %v86, %v687
    %v691 = vmul.f32 %v87, %v687
    %v692 = vadd.f32 %v682, %v688
    %v693 = vadd.f32 %v683, %v689
    %v694 = vadd.f32 %v684, %v690
    %v695 = vadd.f32 %v685, %v691
    %s696 = sld [smem:[#allocation2 + $0x183]]
    %v697 = vstv %s696
    %v698 = vmul.f32 %v101, %v697
    %v699 = vmul.f32 %v102, %v697
    %v700 = vmul.f32 %v103, %v697
    %v701 = vmul.f32 %v104, %v697
    %v702 = vadd.f32 %v692, %v698
    %v703 = vadd.f32 %v693, %v699
    %v704 = vadd.f32 %v694, %v700
    %v705 = vadd.f32 %v695, %v701
    %s706 = sld [smem:[#allocation4 + $0x3]]
    %v707 = vstv %s706
    %v708 = vadd.f32 %v702, %v707
    %v709 = vadd.f32 %v703, %v707
    %v710 = vadd.f32 %v704, %v707
    %v711 = vadd.f32 %v705, %v707
    %v712 = vmax.f32 %v708, 0.0
    %v713 = vmax.f32 %v709, 0.0
    %v714 = vmax.f32 %v710, 0.0
    %v715 = vmax.f32 %v711, 0.0
    %v716 = vpack.c.bf16 %v714, %v712
    %v717 = vpack.c.bf16 %v715, %v713
    %s718 = scalar_lea.vmem %s3, 300
    %v719 = vld [vmem:[%s718] sm:$0xf]
    %v720 = vld [vmem:[%s718 + $0x4] sm:$0xf]
    %v721 = vld [vmem:[%s718 + $0x8] sm:$0xf]
    %v722 = vld [vmem:[%s718 + $0xc] sm:$0xf]
    %v723 = vld [vmem:[%s718 + $0x10] sm:$0xf]
    %v724 = vld [vmem:[%s718 + $0x14] sm:$0xf]
    %v725 = vld [vmem:[%s718 + $0x18] sm:$0xf]
    %v726 = vld [vmem:[%s718 + $0x1c] sm:$0xf]
    %v727 = vld [vmem:[%s718 + $0x20] sm:$0xf]
    %v728 = vld [vmem:[%s718 + $0x24] sm:$0xf]
    %v729 = vld [vmem:[%s718 + $0x28] sm:$0xf]
    %v730 = vld [vmem:[%s718 + $0x2c] sm:$0xf]
    %v731 = vld [vmem:[%s718 + $0x30] sm:$0xf]
    %v732 = vld [vmem:[%s718 + $0x34] sm:$0xf]
    %v733 = vld [vmem:[%s718 + $0x38] sm:$0xf]
    %v734 = vld [vmem:[%s718 + $0x3c] sm:$0xf]
    %v735 = vld [vmem:[%s718 + $0x40] sm:$0xf]
    %v736 = vld [vmem:[%s718 + $0x44] sm:$0xf]
    %v737 = vld [vmem:[%s718 + $0x48] sm:$0xf]
    %v738 = vld [vmem:[%s718 + $0x4c] sm:$0xf]
    %v739 = vld [vmem:[%s718 + $0x50] sm:$0xf]
    %v740 = vld [vmem:[%s718 + $0x54] sm:$0xf]
    %v741 = vld [vmem:[%s718 + $0x58] sm:$0xf]
    %v742 = vld [vmem:[%s718 + $0x5c] sm:$0xf]
    %v743 = vld [vmem:[%s718 + $0x60] sm:$0x3]
    %v769 = vunpack.c.l.b16 %v719
    %v770 = vunpack.c.l.b16 %v720
    %v771 = vunpack.c.l.b16 %v721
    %v772 = vunpack.c.l.b16 %v722
    %v773 = vunpack.c.l.b16 %v723
    %v774 = vunpack.c.l.b16 %v724
    %v775 = vunpack.c.l.b16 %v725
    %v776 = vunpack.c.l.b16 %v726
    %v777 = vunpack.c.l.b16 %v727
    %v778 = vunpack.c.l.b16 %v728
    %v779 = vunpack.c.l.b16 %v729
    %v780 = vunpack.c.l.b16 %v730
    %v781 = vunpack.c.l.b16 %v731
    %v782 = vunpack.c.l.b16 %v732
    %v783 = vunpack.c.l.b16 %v733
    %v784 = vunpack.c.l.b16 %v734
    %v785 = vunpack.c.l.b16 %v735
    %v786 = vunpack.c.l.b16 %v736
    %v787 = vunpack.c.l.b16 %v737
    %v788 = vunpack.c.l.b16 %v738
    %v789 = vunpack.c.l.b16 %v739
    %v790 = vunpack.c.l.b16 %v740
    %v791 = vunpack.c.l.b16 %v741
    %v792 = vunpack.c.l.b16 %v742
    %v793 = vunpack.c.l.b16 %v743
    %v794 = vpack.c.b16 %v770, %v769
    %v795 = vpack.c.b16 %v772, %v771
    %v796 = vpack.c.b16 %v774, %v773
    %v797 = vpack.c.b16 %v776, %v775
    %v798 = vpack.c.b16 %v778, %v777
    %v799 = vpack.c.b16 %v780, %v779
    %v800 = vpack.c.b16 %v782, %v781
    %v801 = vpack.c.b16 %v784, %v783
    %v802 = vpack.c.b16 %v786, %v785
    %v803 = vpack.c.b16 %v788, %v787
    %v804 = vpack.c.b16 %v790, %v789
    %v805 = vpack.c.b16 %v792, %v791
    %v806 = vpack.c.b16 %v793, %v793
    %v820 = vsel %vm301, %v717, 0
    %v823 = vsel %vm305, %v806, 0
    %825 = vmatprep.subr.bf16.mxu0 0
    %826 = vmatpush1.bf16.msra.mxu0 %v794
    %827 = vmatprep.subr.bf16.mxu0 0
    %828 = vmatpush1.bf16.msra.mxu0 %v795
    %829 = vmatprep.subr.bf16.mxu0 0
    %830 = vmatpush1.bf16.msra.mxu0 %v796
    %831 = vmatprep.subr.bf16.mxu0 0
    %832 = vmatpush1.bf16.msra.mxu0 %v797
    %833 = vmatprep.subr.bf16.mxu0 0
    %834 = vmatpush1.bf16.msra.mxu0 %v798
    %835 = vmatprep.subr.bf16.mxu0 0
    %836 = vmatpush1.bf16.msra.mxu0 %v799
    %837 = vmatprep.subr.bf16.mxu0 0
    %838 = vmatpush1.bf16.msra.mxu0 %v800
    %839 = vmatprep.subr.bf16.mxu0 0
    %840 = vmatpush1.bf16.msra.mxu0 %v801
    %841 = vmatprep.subr.bf16.mxu0 0
    %842 = vmatpush1.bf16.msra.mxu0 %v802
    %843 = vmatprep.subr.bf16.mxu0 0
    %844 = vmatpush1.bf16.msra.mxu0 %v803
    %845 = vmatprep.subr.bf16.mxu0 0
    %846 = vmatpush1.bf16.msra.mxu0 %v804
    %847 = vmatprep.subr.bf16.mxu0 0
    %848 = vmatpush1.bf16.msra.mxu0 %v805
    %849 = vmatprep.subr.bf16.mxu0 0
    %850 = vmatpush1.bf16.msra.mxu0 %v823
    %851 = vmatprep.subr.bf16.mxu0 0
    %852 = vmatpush1.bf16.msra.mxu0 0
    %853 = vmatprep.subr.bf16.mxu0 0
    %854 = vmatpush1.bf16.msra.mxu0 0
    %855 = vmatprep.subr.bf16.mxu0 0
    %856 = vmatpush1.bf16.msra.mxu0 0
    %857 = vmatprep.mubr.bf16.mxu0 %v820
    %858 = vmatmul.mubr.bf16.gmra.mrb[0].mxu0 %v716
    %v859 = vpop.f32.mrb[0].mxu0
    %v860 = vadd.f32 0.0, %v859
    %v861 = vpop.f32.mrb[0].mxu0
    %v862 = vpop.f32.mrb[0].mxu0
    %v863 = vadd.f32 0.0, %v862
    %v864 = vpop.f32.mrb[0].mxu0
    %865 = vdwg.mxu0
    %v866 = vadd.f32 %v668, %v860
    %v867 = vadd.f32 %v669, %v863
    %s868 = sld [smem:[#allocation2 + $0x200]]
    %v869 = vstv %s868
    %v870 = vmul.f32 %v54, %v869
    %v871 = vmul.f32 %v55, %v869
    %v872 = vmul.f32 %v56, %v869
    %v873 = vmul.f32 %v57, %v869
    %s874 = sld [smem:[#allocation2 + $0x201]]
    %v875 = vstv %s874
    %v876 = vmul.f32 %v67, %v875
    %v877 = vmul.f32 %v68, %v875
    %v878 = vmul.f32 %v69, %v875
    %v879 = vmul.f32 %v70, %v875
    %v880 = vadd.f32 %v870, %v876
    %v881 = vadd.f32 %v871, %v877
    %v882 = vadd.f32 %v872, %v878
    %v883 = vadd.f32 %v873, %v879
    %s884 = sld [smem:[#allocation2 + $0x202]]
    %v885 = vstv %s884
    %v886 = vmul.f32 %v84, %v885
    %v887 = vmul.f32 %v85, %v885
    %v888 = vmul.f32 %v86, %v885
    %v889 = vmul.f32 %v87, %v885
    %v890 = vadd.f32 %v880, %v886
    %v891 = vadd.f32 %v881, %v887
    %v892 = vadd.f32 %v882, %v888
    %v893 = vadd.f32 %v883, %v889
    %s894 = sld [smem:[#allocation2 + $0x203]]
    %v895 = vstv %s894
    %v896 = vmul.f32 %v101, %v895
    %v897 = vmul.f32 %v102, %v895
    %v898 = vmul.f32 %v103, %v895
    %v899 = vmul.f32 %v104, %v895
    %v900 = vadd.f32 %v890, %v896
    %v901 = vadd.f32 %v891, %v897
    %v902 = vadd.f32 %v892, %v898
    %v903 = vadd.f32 %v893, %v899
    %s904 = sld [smem:[#allocation4 + $0x4]]
    %v905 = vstv %s904
    %v906 = vadd.f32 %v900, %v905
    %v907 = vadd.f32 %v901, %v905
    %v908 = vadd.f32 %v902, %v905
    %v909 = vadd.f32 %v903, %v905
    %v910 = vmax.f32 %v906, 0.0
    %v911 = vmax.f32 %v907, 0.0
    %v912 = vmax.f32 %v908, 0.0
    %v913 = vmax.f32 %v909, 0.0
    %v914 = vpack.c.bf16 %v912, %v910
    %v915 = vpack.c.bf16 %v913, %v911
    %s916 = scalar_lea.vmem %s3, 400
    %v917 = vld [vmem:[%s916] sm:$0xf]
    %v918 = vld [vmem:[%s916 + $0x4] sm:$0xf]
    %v919 = vld [vmem:[%s916 + $0x8] sm:$0xf]
    %v920 = vld [vmem:[%s916 + $0xc] sm:$0xf]
    %v921 = vld [vmem:[%s916 + $0x10] sm:$0xf]
    %v922 = vld [vmem:[%s916 + $0x14] sm:$0xf]
    %v923 = vld [vmem:[%s916 + $0x18] sm:$0xf]
    %v924 = vld [vmem:[%s916 + $0x1c] sm:$0xf]
    %v925 = vld [vmem:[%s916 + $0x20] sm:$0xf]
    %v926 = vld [vmem:[%s916 + $0x24] sm:$0xf]
    %v927 = vld [vmem:[%s916 + $0x28] sm:$0xf]
    %v928 = vld [vmem:[%s916 + $0x2c] sm:$0xf]
    %v929 = vld [vmem:[%s916 + $0x30] sm:$0xf]
    %v930 = vld [vmem:[%s916 + $0x34] sm:$0xf]
    %v931 = vld [vmem:[%s916 + $0x38] sm:$0xf]
    %v932 = vld [vmem:[%s916 + $0x3c] sm:$0xf]
    %v933 = vld [vmem:[%s916 + $0x40] sm:$0xf]
    %v934 = vld [vmem:[%s916 + $0x44] sm:$0xf]
    %v935 = vld [vmem:[%s916 + $0x48] sm:$0xf]
    %v936 = vld [vmem:[%s916 + $0x4c] sm:$0xf]
    %v937 = vld [vmem:[%s916 + $0x50] sm:$0xf]
    %v938 = vld [vmem:[%s916 + $0x54] sm:$0xf]
    %v939 = vld [vmem:[%s916 + $0x58] sm:$0xf]
    %v940 = vld [vmem:[%s916 + $0x5c] sm:$0xf]
    %v941 = vld [vmem:[%s916 + $0x60] sm:$0x3]
    %v967 = vunpack.c.l.b16 %v917
    %v968 = vunpack.c.l.b16 %v918
    %v969 = vunpack.c.l.b16 %v919
    %v970 = vunpack.c.l.b16 %v920
    %v971 = vunpack.c.l.b16 %v921
    %v972 = vunpack.c.l.b16 %v922
    %v973 = vunpack.c.l.b16 %v923
    %v974 = vunpack.c.l.b16 %v924
    %v975 = vunpack.c.l.b16 %v925
    %v976 = vunpack.c.l.b16 %v926
    %v977 = vunpack.c.l.b16 %v927
    %v978 = vunpack.c.l.b16 %v928
    %v979 = vunpack.c.l.b16 %v929
    %v980 = vunpack.c.l.b16 %v930
    %v981 = vunpack.c.l.b16 %v931
    %v982 = vunpack.c.l.b16 %v932
    %v983 = vunpack.c.l.b16 %v933
    %v984 = vunpack.c.l.b16 %v934
    %v985 = vunpack.c.l.b16 %v935
    %v986 = vunpack.c.l.b16 %v936
    %v987 = vunpack.c.l.b16 %v937
    %v988 = vunpack.c.l.b16 %v938
    %v989 = vunpack.c.l.b16 %v939
    %v990 = vunpack.c.l.b16 %v940
    %v991 = vunpack.c.l.b16 %v941
    %v992 = vpack.c.b16 %v968, %v967
    %v993 = vpack.c.b16 %v970, %v969
    %v994 = vpack.c.b16 %v972, %v971
    %v995 = vpack.c.b16 %v974, %v973
    %v996 = vpack.c.b16 %v976, %v975
    %v997 = vpack.c.b16 %v978, %v977
    %v998 = vpack.c.b16 %v980, %v979
    %v999 = vpack.c.b16 %v982, %v981
    %v1000 = vpack.c.b16 %v984, %v983
    %v1001 = vpack.c.b16 %v986, %v985
    %v1002 = vpack.c.b16 %v988, %v987
    %v1003 = vpack.c.b16 %v990, %v989
    %v1004 = vpack.c.b16 %v991, %v991
    %v1018 = vsel %vm301, %v915, 0
    %v1021 = vsel %vm305, %v1004, 0
    %1023 = vmatprep.subr.bf16.mxu0 0
    %1024 = vmatpush1.bf16.msra.mxu0 %v992
    %1025 = vmatprep.subr.bf16.mxu0 0
    %1026 = vmatpush1.bf16.msra.mxu0 %v993
    %1027 = vmatprep.subr.bf16.mxu0 0
    %1028 = vmatpush1.bf16.msra.mxu0 %v994
    %1029 = vmatprep.subr.bf16.mxu0 0
    %1030 = vmatpush1.bf16.msra.mxu0 %v995
    %1031 = vmatprep.subr.bf16.mxu0 0
    %1032 = vmatpush1.bf16.msra.mxu0 %v996
    %1033 = vmatprep.subr.bf16.mxu0 0
    %1034 = vmatpush1.bf16.msra.mxu0 %v997
    %1035 = vmatprep.subr.bf16.mxu0 0
    %1036 = vmatpush1.bf16.msra.mxu0 %v998
    %1037 = vmatprep.subr.bf16.mxu0 0
    %1038 = vmatpush1.bf16.msra.mxu0 %v999
    %1039 = vmatprep.subr.bf16.mxu0 0
    %1040 = vmatpush1.bf16.msra.mxu0 %v1000
    %1041 = vmatprep.subr.bf16.mxu0 0
    %1042 = vmatpush1.bf16.msra.mxu0 %v1001
    %1043 = vmatprep.subr.bf16.mxu0 0
    %1044 = vmatpush1.bf16.msra.mxu0 %v1002
    %1045 = vmatprep.subr.bf16.mxu0 0
    %1046 = vmatpush1.bf16.msra.mxu0 %v1003
    %1047 = vmatprep.subr.bf16.mxu0 0
    %1048 = vmatpush1.bf16.msra.mxu0 %v1021
    %1049 = vmatprep.subr.bf16.mxu0 0
    %1050 = vmatpush1.bf16.msra.mxu0 0
    %1051 = vmatprep.subr.bf16.mxu0 0
    %1052 = vmatpush1.bf16.msra.mxu0 0
    %1053 = vmatprep.subr.bf16.mxu0 0
    %1054 = vmatpush1.bf16.msra.mxu0 0
    %1055 = vmatprep.mubr.bf16.mxu0 %v1018
    %1056 = vmatmul.mubr.bf16.gmra.mrb[0].mxu0 %v914
    %v1057 = vpop.f32.mrb[0].mxu0
    %v1058 = vadd.f32 0.0, %v1057
    %v1059 = vpop.f32.mrb[0].mxu0
    %v1060 = vpop.f32.mrb[0].mxu0
    %v1061 = vadd.f32 0.0, %v1060
    %v1062 = vpop.f32.mrb[0].mxu0
    %1063 = vdwg.mxu0
    %v1064 = vadd.f32 %v866, %v1058
    %v1065 = vadd.f32 %v867, %v1061
    %v1066 = vld [vmem:[%s4] sm:$0x1]
    %v1068 = vlaneseq
    %v1069 = vshrl.u32 %v1068, 7
    %v1070 = vsub.s32 0, %v1069
    %v1071 = vrot.slane %v1066, %v1070
    %v1073 = vadd.f32 %v1064, %v1071
    %v1074 = vadd.f32 %v1065, %v1071
    %v1075 = vmax.f32 %v1073, 0.0
    %v1076 = vmax.f32 %v1074, 0.0
    %v1077 = vpack.c.bf16 %v1076, %v1075
    %v1078 = vld [vmem:[%s5] sm:$0xf]
    %v1079 = vld [vmem:[%s5 + $0x4] sm:$0xf]
    %v1080 = vld [vmem:[%s5 + $0x8] sm:$0xf]
    %v1081 = vld [vmem:[%s5 + $0xc] sm:$0xf]
    %v1082 = vld [vmem:[%s5 + $0x10] sm:$0xf]
    %v1083 = vld [vmem:[%s5 + $0x14] sm:$0xf]
    %v1084 = vld [vmem:[%s5 + $0x18] sm:$0xf]
    %v1085 = vld [vmem:[%s5 + $0x1c] sm:$0xf]
    %v1086 = vld [vmem:[%s5 + $0x20] sm:$0xf]
    %v1087 = vld [vmem:[%s5 + $0x24] sm:$0xf]
    %v1088 = vld [vmem:[%s5 + $0x28] sm:$0xf]
    %v1089 = vld [vmem:[%s5 + $0x2c] sm:$0xf]
    %v1090 = vld [vmem:[%s5 + $0x30] sm:$0xf]
    %v1091 = vld [vmem:[%s5 + $0x34] sm:$0xf]
    %v1092 = vld [vmem:[%s5 + $0x38] sm:$0xf]
    %v1093 = vld [vmem:[%s5 + $0x3c] sm:$0xf]
    %v1094 = vld [vmem:[%s6] sm:$0x1]
    %v1096 = vlaneseq
    %v1097 = vshrl.u32 %v1096, 7
    %v1098 = vsub.s32 0, %v1097
    %v1099 = vrot.slane %v1094, %v1098
    %v1117 = vunpack.c.l.b16 %v1078
    %v1118 = vunpack.c.l.b16 %v1079
    %v1119 = vunpack.c.l.b16 %v1080
    %v1120 = vunpack.c.l.b16 %v1081
    %v1121 = vunpack.c.l.b16 %v1082
    %v1122 = vunpack.c.l.b16 %v1083
    %v1123 = vunpack.c.l.b16 %v1084
    %v1124 = vunpack.c.l.b16 %v1085
    %v1125 = vunpack.c.l.b16 %v1086
    %v1126 = vunpack.c.l.b16 %v1087
    %v1127 = vunpack.c.l.b16 %v1088
    %v1128 = vunpack.c.l.b16 %v1089
    %v1129 = vunpack.c.l.b16 %v1090
    %v1130 = vunpack.c.l.b16 %v1091
    %v1131 = vunpack.c.l.b16 %v1092
    %v1132 = vunpack.c.l.b16 %v1093
    %v1133 = vpack.c.b16 %v1118, %v1117
    %v1134 = vpack.c.b16 %v1120, %v1119
    %v1135 = vpack.c.b16 %v1122, %v1121
    %v1136 = vpack.c.b16 %v1124, %v1123
    %v1137 = vpack.c.b16 %v1126, %v1125
    %v1138 = vpack.c.b16 %v1128, %v1127
    %v1139 = vpack.c.b16 %v1130, %v1129
    %v1140 = vpack.c.b16 %v1132, %v1131
    %1149 = vmatprep.subr.bf16.mxu0 0
    %1150 = vmatpush1.bf16.msra.mxu0 %v1133
    %1151 = vmatprep.subr.bf16.mxu0 0
    %1152 = vmatpush1.bf16.msra.mxu0 %v1134
    %1153 = vmatprep.subr.bf16.mxu0 0
    %1154 = vmatpush1.bf16.msra.mxu0 %v1135
    %1155 = vmatprep.subr.bf16.mxu0 0
    %1156 = vmatpush1.bf16.msra.mxu0 %v1136
    %1157 = vmatprep.subr.bf16.mxu0 0
    %1158 = vmatpush1.bf16.msra.mxu0 %v1137
    %1159 = vmatprep.subr.bf16.mxu0 0
    %1160 = vmatpush1.bf16.msra.mxu0 %v1138
    %1161 = vmatprep.subr.bf16.mxu0 0
    %1162 = vmatpush1.bf16.msra.mxu0 %v1139
    %1163 = vmatprep.subr.bf16.mxu0 0
    %1164 = vmatpush1.bf16.msra.mxu0 %v1140
    %1165 = vmatprep.subr.bf16.mxu0 0
    %1166 = vmatpush1.bf16.msra.mxu0 0
    %1167 = vmatprep.subr.bf16.mxu0 0
    %1168 = vmatpush1.bf16.msra.mxu0 0
    %1169 = vmatprep.subr.bf16.mxu0 0
    %1170 = vmatpush1.bf16.msra.mxu0 0
    %1171 = vmatprep.subr.bf16.mxu0 0
    %1172 = vmatpush1.bf16.msra.mxu0 0
    %1173 = vmatprep.subr.bf16.mxu0 0
    %1174 = vmatpush1.bf16.msra.mxu0 0
    %1175 = vmatprep.subr.bf16.mxu0 0
    %1176 = vmatpush1.bf16.msra.mxu0 0
    %1177 = vmatprep.subr.bf16.mxu0 0
    %1178 = vmatpush1.bf16.msra.mxu0 0
    %1179 = vmatprep.subr.bf16.mxu0 0
    %1180 = vmatpush1.bf16.msra.mxu0 0
    %1181 = vmatprep.mubr.bf16.mxu0 0
    %1182 = vmatmul.mubr.bf16.gmra.mrb[0].mxu0 %v1077
    %v1183 = vpop.f32.mrb[0].mxu0
    %v1184 = vadd.f32 %v1099, %v1183
    %v1185 = vpop.f32.mrb[0].mxu0
    %v1186 = vpop.f32.mrb[0].mxu0
    %v1187 = vadd.f32 %v1099, %v1186
    %v1188 = vpop.f32.mrb[0].mxu0
    %1189 = vdwg.mxu0
    %1190 = vst [vmem:[%s7] sm:$0xff] %v1184
    %1191 = vst [vmem:[%s7 + $0x8] sm:$0xff] %v1187
    // Predicated region
    $region38: #{sarda_forward.1} parent=1 // pred_check
      _
    $region39: #{sarda_forward.1} parent=1 // pred_check_branch
      %1193 = sbr.rel (0) target = $region41
    $region40: #{sarda_forward.1} parent=1 // pred_region
      _
    $region41: #{sarda_forward.1} parent=1 // pred_fallthru
      _
    // Predicated region
    $region42: #{sarda_forward.1} parent=1 // pred_check
      _
    $region43: #{sarda_forward.1} parent=1 // pred_check_branch
      %1195 = sbr.rel (0) target = $region45
    $region44: #{sarda_forward.1} parent=1 // pred_region
      _
    $region45: #{sarda_forward.1} parent=1 // pred_fallthru
      _
    %1196 = vsyncpa [#allocation3], 1
    %1197 = vsyncpa [#allocation5], 1

</llo_original>
